<compile_context>
chip_gen: v7x
topology: tpu7x:2x2x1
jax: 0.10.0
libtpu: 0.0.40
codegen_flags: <defaults>
</compile_context>

<pallas_src>
import math
from functools import partial

import jax
import jax.numpy as jnp
from jax.experimental import pallas as pl
from jax.experimental.pallas import tpu as pltpu


def _cwra_kernel(q_ref, k_ref, v_ref, o_ref, *, require_scaling: bool, scale: float):
    """One (Nt, C, H, W) block: per (n, w) lane-column, S = Q K^T over C
    (seq-len H), optionally scaled + softmaxed, then out = S V.  All
    contractions run on the VPU; W lives in the lane dim throughout."""
    q = q_ref[...].astype(jnp.float32)   # (Nt, C, H, W)
    k = k_ref[...].astype(jnp.float32)
    v = v_ref[...].astype(jnp.float32)
    C = q.shape[1]

    # scores s[n, i, j, w] = sum_c q[n, c, i, w] * k[n, c, j, w]  -> (Nt, H, H, W)
    # TODO(synk): for large C (>~64) switch this unrolled VPU contraction to an
    # MXU lax.dot_general with C as the contraction dimension.
    s = None
    for c in range(C):
        term = q[:, c, :, None, :] * k[:, c, None, :, :]        # (Nt, H, H, W)
        s = term if s is None else s + term

    if require_scaling:
        s = s * scale
        m = jnp.max(s, axis=2, keepdims=True)                   # (Nt, H, 1, W)
        e = jnp.exp(s - m)
        denom = jnp.sum(e, axis=2, keepdims=True)
        p = e * pl.reciprocal(denom, approx=True)
    else:
        p = s

    # out[n, c, i, w] = sum_j p[n, i, j, w] * v[n, c, j, w]
    outs = []
    for c in range(C):
        outs.append(jnp.sum(p * v[:, c, None, :, :], axis=2))   # (Nt, H, W)
    out = jnp.stack(outs, axis=1)                               # (Nt, C, H, W)
    o_ref[...] = out.astype(o_ref.dtype)


def _pick_block_batch(N, C, H, W, itemsize, budget_bytes=20 * 1024 * 1024):
    """Largest Nt (divisor of N) whose per-block working set fits the budget,
    while keeping >= 2 grid steps so v7x's two TensorCores both get work."""
    def cost(nt):
        io = 8 * nt * C * H * W * itemsize      # q,k,v,out blocks, double-buffered
        vals = 3 * nt * C * H * W * 4           # f32 in-register copies of q,k,v
        scores = 3 * nt * H * H * W * 4         # score tile + broadcast temporaries
        return io + vals + scores

    best = 1
    for nt in range(1, N + 1):
        if N % nt != 0:
            continue
        if cost(nt) > budget_bytes:
            continue
        if N >= 2 and N // nt < 2:
            continue
        best = nt
    return best


def channel_wise_row_attention(q, k, v, require_scaling: bool = True):
    """JAX/Pallas equivalent of ChannelWiseRowAttention.forward.

    q, k, v: (N, C, H, W) arrays. Returns (N, C, H, W).
    """
    N, C, H, W = q.shape
    itemsize = q.dtype.itemsize
    nt = _pick_block_batch(N, C, H, W, itemsize)
    grid = (N // nt,)

    # Last two block dims equal the full (H, W) extents -> no (8,128) issue,
    # and output stores are contiguous slabs of the real NCHW layout.
    spec = pl.BlockSpec((nt, C, H, W), lambda i: (i, 0, 0, 0))

    flops = 4 * N * W * H * H * C + (8 * N * W * H * H if require_scaling else 0)
    cost = pl.CostEstimate(
        flops=flops,
        transcendentals=(N * W * H * H) if require_scaling else 0,
        bytes_accessed=4 * N * C * H * W * itemsize,
    )

    return pl.pallas_call(
        partial(_cwra_kernel, require_scaling=require_scaling,
                scale=1.0 / math.sqrt(C)),
        out_shape=jax.ShapeDtypeStruct((N, C, H, W), q.dtype),
        grid_spec=pltpu.PrefetchScalarGridSpec(
            num_scalar_prefetch=0,
            grid=grid,
            in_specs=[spec, spec, spec],
            out_specs=spec,
        ),
        compiler_params=pltpu.CompilerParams(
            dimension_semantics=("parallel",),
            vmem_limit_bytes=32 * 1024 * 1024,
        ),
        cost_estimate=cost,
    )(q, k, v)


def _reference(q, k, v, require_scaling=True):
    """Pure-JAX reference mirroring the PyTorch module."""
    qp = jnp.transpose(q, (0, 3, 2, 1))
    kp = jnp.transpose(k, (0, 3, 2, 1))
    vp = jnp.transpose(v, (0, 3, 2, 1))
    attn = jnp.einsum('nwhc,nwkc->nwhk', qp, kp)
    if require_scaling:
        attn = attn / math.sqrt(kp.shape[-1])
        attn = jax.nn.softmax(attn, axis=-1)
    out = jnp.einsum('nwhk,nwkc->nwhc', attn, vp)
    return jnp.transpose(out, (0, 3, 2, 1))


if __name__ == "__main__":
    key = jax.random.PRNGKey(0)
    kq, kk, kv = jax.random.split(key, 3)

    N, C, H, W = 2, 4, 16, 16
    q = jax.random.normal(kq, (N, C, H, W), dtype=jnp.float32)
    k = jax.random.normal(kk, (N, C, H, W), dtype=jnp.float32)
    v = jax.random.normal(kv, (N, C, H, W), dtype=jnp.float32)

    # Scaled (softmax) path — module default.
    out = channel_wise_row_attention(q, k, v, require_scaling=True)
    out = jax.block_until_ready(out)
    ref = _reference(q, k, v, require_scaling=True)
    assert out.shape == (N, C, H, W)
    assert jnp.allclose(out, ref, atol=2e-3, rtol=2e-3), "scaled attention mismatch"

    # Unscaled (plain dot-product) path.
    out_ns = channel_wise_row_attention(q, k, v, require_scaling=False)
    out_ns = jax.block_until_ready(out_ns)
    ref_ns = _reference(q, k, v, require_scaling=False)
    assert jnp.allclose(out_ns, ref_ns, atol=2e-3, rtol=2e-3), "dot-product attention mismatch"

    print("KERNEL_OK")
</pallas_src>

<mosaic_0001>
module attributes {stable_mosaic.version = 11 : i64} {
  func.func @_cwra_kernel(%arg0: i32, %arg1: memref<1x4x16x16xf32, #tpu.memory_space<vmem>>, %arg2: memref<1x4x16x16xf32, #tpu.memory_space<vmem>>, %arg3: memref<1x4x16x16xf32, #tpu.memory_space<vmem>>, %arg4: memref<1x4x16x16xf32, #tpu.memory_space<vmem>>) attributes {dimension_semantics = [#tpu.dimension_semantics<parallel>], iteration_bounds = array<i64: 2>, scalar_prefetch = 0 : i64, scratch_operands = 0 : i64, tpu.core_type = #tpu.core_type<tc>, window_params = [{transform_indices = @transform_0, window_bounds = array<i64: 1, 4, 16, 16>}, {transform_indices = @transform_1, window_bounds = array<i64: 1, 4, 16, 16>}, {transform_indices = @transform_2, window_bounds = array<i64: 1, 4, 16, 16>}, {transform_indices = @transform_3, window_bounds = array<i64: 1, 4, 16, 16>}]} {
    %c0 = arith.constant 0 : index
    %c0_0 = arith.constant 0 : index
    %c0_1 = arith.constant 0 : index
    %c0_2 = arith.constant 0 : index
    %0 = vector.load %arg1[%c0, %c0_0, %c0_1, %c0_2] : memref<1x4x16x16xf32, #tpu.memory_space<vmem>>, vector<1x4x16x16xf32>
    %c0_3 = arith.constant 0 : index
    %c0_4 = arith.constant 0 : index
    %c0_5 = arith.constant 0 : index
    %c0_6 = arith.constant 0 : index
    %1 = vector.load %arg2[%c0_3, %c0_4, %c0_5, %c0_6] : memref<1x4x16x16xf32, #tpu.memory_space<vmem>>, vector<1x4x16x16xf32>
    %c0_7 = arith.constant 0 : index
    %c0_8 = arith.constant 0 : index
    %c0_9 = arith.constant 0 : index
    %c0_10 = arith.constant 0 : index
    %2 = vector.load %arg3[%c0_7, %c0_8, %c0_9, %c0_10] : memref<1x4x16x16xf32, #tpu.memory_space<vmem>>, vector<1x4x16x16xf32>
    %3 = vector.extract_strided_slice %0 {offsets = [0, 0, 0, 0], sizes = [1, 1, 16, 16], strides = [1, 1, 1, 1]} : vector<1x4x16x16xf32> to vector<1x1x16x16xf32>
    %4 = vector.shape_cast %3 : vector<1x1x16x16xf32> to vector<1x16x16xf32>
    %5 = vector.shape_cast %4 : vector<1x16x16xf32> to vector<1x16x1x16xf32>
    %6 = vector.extract_strided_slice %1 {offsets = [0, 0, 0, 0], sizes = [1, 1, 16, 16], strides = [1, 1, 1, 1]} : vector<1x4x16x16xf32> to vector<1x1x16x16xf32>
    %7 = vector.shape_cast %6 : vector<1x1x16x16xf32> to vector<1x16x16xf32>
    %8 = vector.shape_cast %7 : vector<1x16x16xf32> to vector<1x1x16x16xf32>
    %9 = vector.broadcast %5 : vector<1x16x1x16xf32> to vector<1x16x16x16xf32>
    %10 = vector.broadcast %8 : vector<1x1x16x16xf32> to vector<1x16x16x16xf32>
    %11 = arith.mulf %9, %10 : vector<1x16x16x16xf32>
    %12 = vector.extract_strided_slice %0 {offsets = [0, 1, 0, 0], sizes = [1, 1, 16, 16], strides = [1, 1, 1, 1]} : vector<1x4x16x16xf32> to vector<1x1x16x16xf32>
    %13 = vector.shape_cast %12 : vector<1x1x16x16xf32> to vector<1x16x16xf32>
    %14 = vector.shape_cast %13 : vector<1x16x16xf32> to vector<1x16x1x16xf32>
    %15 = vector.extract_strided_slice %1 {offsets = [0, 1, 0, 0], sizes = [1, 1, 16, 16], strides = [1, 1, 1, 1]} : vector<1x4x16x16xf32> to vector<1x1x16x16xf32>
    %16 = vector.shape_cast %15 : vector<1x1x16x16xf32> to vector<1x16x16xf32>
    %17 = vector.shape_cast %16 : vector<1x16x16xf32> to vector<1x1x16x16xf32>
    %18 = vector.broadcast %14 : vector<1x16x1x16xf32> to vector<1x16x16x16xf32>
    %19 = vector.broadcast %17 : vector<1x1x16x16xf32> to vector<1x16x16x16xf32>
    %20 = arith.mulf %18, %19 : vector<1x16x16x16xf32>
    %21 = arith.addf %11, %20 : vector<1x16x16x16xf32>
    %22 = vector.extract_strided_slice %0 {offsets = [0, 2, 0, 0], sizes = [1, 1, 16, 16], strides = [1, 1, 1, 1]} : vector<1x4x16x16xf32> to vector<1x1x16x16xf32>
    %23 = vector.shape_cast %22 : vector<1x1x16x16xf32> to vector<1x16x16xf32>
    %24 = vector.shape_cast %23 : vector<1x16x16xf32> to vector<1x16x1x16xf32>
    %25 = vector.extract_strided_slice %1 {offsets = [0, 2, 0, 0], sizes = [1, 1, 16, 16], strides = [1, 1, 1, 1]} : vector<1x4x16x16xf32> to vector<1x1x16x16xf32>
    %26 = vector.shape_cast %25 : vector<1x1x16x16xf32> to vector<1x16x16xf32>
    %27 = vector.shape_cast %26 : vector<1x16x16xf32> to vector<1x1x16x16xf32>
    %28 = vector.broadcast %24 : vector<1x16x1x16xf32> to vector<1x16x16x16xf32>
    %29 = vector.broadcast %27 : vector<1x1x16x16xf32> to vector<1x16x16x16xf32>
    %30 = arith.mulf %28, %29 : vector<1x16x16x16xf32>
    %31 = arith.addf %21, %30 : vector<1x16x16x16xf32>
    %32 = vector.extract_strided_slice %0 {offsets = [0, 3, 0, 0], sizes = [1, 1, 16, 16], strides = [1, 1, 1, 1]} : vector<1x4x16x16xf32> to vector<1x1x16x16xf32>
    %33 = vector.shape_cast %32 : vector<1x1x16x16xf32> to vector<1x16x16xf32>
    %34 = vector.shape_cast %33 : vector<1x16x16xf32> to vector<1x16x1x16xf32>
    %35 = vector.extract_strided_slice %1 {offsets = [0, 3, 0, 0], sizes = [1, 1, 16, 16], strides = [1, 1, 1, 1]} : vector<1x4x16x16xf32> to vector<1x1x16x16xf32>
    %36 = vector.shape_cast %35 : vector<1x1x16x16xf32> to vector<1x16x16xf32>
    %37 = vector.shape_cast %36 : vector<1x16x16xf32> to vector<1x1x16x16xf32>
    %38 = vector.broadcast %34 : vector<1x16x1x16xf32> to vector<1x16x16x16xf32>
    %39 = vector.broadcast %37 : vector<1x1x16x16xf32> to vector<1x16x16x16xf32>
    %40 = arith.mulf %38, %39 : vector<1x16x16x16xf32>
    %41 = arith.addf %31, %40 : vector<1x16x16x16xf32>
    %cst = arith.constant 5.000000e-01 : f32
    %42 = vector.broadcast %cst : f32 to vector<1x16x16x16xf32>
    %43 = arith.mulf %41, %42 : vector<1x16x16x16xf32>
    %cst_11 = arith.constant dense<0xFF800000> : vector<1x16x16xf32>
    %44 = vector.multi_reduction <maximumf>, %43, %cst_11 [2] : vector<1x16x16x16xf32> to vector<1x16x16xf32>
    %45 = vector.shape_cast %44 : vector<1x16x16xf32> to vector<1x16x1x16xf32>
    %46 = vector.broadcast %45 : vector<1x16x1x16xf32> to vector<1x16x16x16xf32>
    %47 = arith.subf %43, %46 : vector<1x16x16x16xf32>
    %48 = math.exp %47 : vector<1x16x16x16xf32>
    %cst_12 = arith.constant dense<0.000000e+00> : vector<1x16x16xf32>
    %49 = vector.multi_reduction <add>, %48, %cst_12 [2] : vector<1x16x16x16xf32> to vector<1x16x16xf32>
    %50 = vector.shape_cast %49 : vector<1x16x16xf32> to vector<1x16x1x16xf32>
    %51 = tpu.reciprocal %50 {approx = true} : vector<1x16x1x16xf32> -> vector<1x16x1x16xf32>
    %52 = vector.broadcast %51 : vector<1x16x1x16xf32> to vector<1x16x16x16xf32>
    %53 = arith.mulf %48, %52 : vector<1x16x16x16xf32>
    %54 = vector.extract_strided_slice %2 {offsets = [0, 0, 0, 0], sizes = [1, 1, 16, 16], strides = [1, 1, 1, 1]} : vector<1x4x16x16xf32> to vector<1x1x16x16xf32>
    %55 = vector.shape_cast %54 : vector<1x1x16x16xf32> to vector<1x16x16xf32>
    %56 = vector.shape_cast %55 : vector<1x16x16xf32> to vector<1x1x16x16xf32>
    %57 = vector.broadcast %56 : vector<1x1x16x16xf32> to vector<1x16x16x16xf32>
    %58 = arith.mulf %53, %57 : vector<1x16x16x16xf32>
    %cst_13 = arith.constant dense<0.000000e+00> : vector<1x16x16xf32>
    %59 = vector.multi_reduction <add>, %58, %cst_13 [2] : vector<1x16x16x16xf32> to vector<1x16x16xf32>
    %60 = vector.extract_strided_slice %2 {offsets = [0, 1, 0, 0], sizes = [1, 1, 16, 16], strides = [1, 1, 1, 1]} : vector<1x4x16x16xf32> to vector<1x1x16x16xf32>
    %61 = vector.shape_cast %60 : vector<1x1x16x16xf32> to vector<1x16x16xf32>
    %62 = vector.shape_cast %61 : vector<1x16x16xf32> to vector<1x1x16x16xf32>
    %63 = vector.broadcast %62 : vector<1x1x16x16xf32> to vector<1x16x16x16xf32>
    %64 = arith.mulf %53, %63 : vector<1x16x16x16xf32>
    %cst_14 = arith.constant dense<0.000000e+00> : vector<1x16x16xf32>
    %65 = vector.multi_reduction <add>, %64, %cst_14 [2] : vector<1x16x16x16xf32> to vector<1x16x16xf32>
    %66 = vector.extract_strided_slice %2 {offsets = [0, 2, 0, 0], sizes = [1, 1, 16, 16], strides = [1, 1, 1, 1]} : vector<1x4x16x16xf32> to vector<1x1x16x16xf32>
    %67 = vector.shape_cast %66 : vector<1x1x16x16xf32> to vector<1x16x16xf32>
    %68 = vector.shape_cast %67 : vector<1x16x16xf32> to vector<1x1x16x16xf32>
    %69 = vector.broadcast %68 : vector<1x1x16x16xf32> to vector<1x16x16x16xf32>
    %70 = arith.mulf %53, %69 : vector<1x16x16x16xf32>
    %cst_15 = arith.constant dense<0.000000e+00> : vector<1x16x16xf32>
    %71 = vector.multi_reduction <add>, %70, %cst_15 [2] : vector<1x16x16x16xf32> to vector<1x16x16xf32>
    %72 = vector.extract_strided_slice %2 {offsets = [0, 3, 0, 0], sizes = [1, 1, 16, 16], strides = [1, 1, 1, 1]} : vector<1x4x16x16xf32> to vector<1x1x16x16xf32>
    %73 = vector.shape_cast %72 : vector<1x1x16x16xf32> to vector<1x16x16xf32>
    %74 = vector.shape_cast %73 : vector<1x16x16xf32> to vector<1x1x16x16xf32>
    %75 = vector.broadcast %74 : vector<1x1x16x16xf32> to vector<1x16x16x16xf32>
    %76 = arith.mulf %53, %75 : vector<1x16x16x16xf32>
    %cst_16 = arith.constant dense<0.000000e+00> : vector<1x16x16xf32>
    %77 = vector.multi_reduction <add>, %76, %cst_16 [2] : vector<1x16x16x16xf32> to vector<1x16x16xf32>
    %78 = vector.shape_cast %59 : vector<1x16x16xf32> to vector<1x1x16x16xf32>
    %79 = vector.shape_cast %65 : vector<1x16x16xf32> to vector<1x1x16x16xf32>
    %80 = vector.shape_cast %71 : vector<1x16x16xf32> to vector<1x1x16x16xf32>
    %81 = vector.shape_cast %77 : vector<1x16x16xf32> to vector<1x1x16x16xf32>
    %82 = tpu.concatenate %78, %79, %80, %81 in 1 : vector<1x1x16x16xf32>, vector<1x1x16x16xf32>, vector<1x1x16x16xf32>, vector<1x1x16x16xf32> -> vector<1x4x16x16xf32>
    %c0_17 = arith.constant 0 : index
    %c0_18 = arith.constant 0 : index
    %c0_19 = arith.constant 0 : index
    %c0_20 = arith.constant 0 : index
    %83 = vector.load %arg4[%c0_17, %c0_18, %c0_19, %c0_20] : memref<1x4x16x16xf32, #tpu.memory_space<vmem>>, vector<1x4x16x16xf32>
    tpu.vector_store %arg4[%c0_17, %c0_18, %c0_19, %c0_20], %82 {strides = array<i32>} : memref<1x4x16x16xf32, #tpu.memory_space<vmem>>, vector<1x4x16x16xf32>,
    return
  }
  func.func @transform_0(%arg0: i32) -> (i32, i32, i32, i32) {
    %c0_i32 = arith.constant 0 : i32
    %c0_i32_0 = arith.constant 0 : i32
    %c0_i32_1 = arith.constant 0 : i32
    %c0_i32_2 = arith.constant 0 : i32
    return %arg0, %c0_i32, %c0_i32_0, %c0_i32_1 : i32, i32, i32, i32
  }
  func.func @transform_1(%arg0: i32) -> (i32, i32, i32, i32) {
    %c0_i32 = arith.constant 0 : i32
    %c0_i32_0 = arith.constant 0 : i32
    %c0_i32_1 = arith.constant 0 : i32
    %c0_i32_2 = arith.constant 0 : i32
    return %arg0, %c0_i32, %c0_i32_0, %c0_i32_1 : i32, i32, i32, i32
  }
  func.func @transform_2(%arg0: i32) -> (i32, i32, i32, i32) {
    %c0_i32 = arith.constant 0 : i32
    %c0_i32_0 = arith.constant 0 : i32
    %c0_i32_1 = arith.constant 0 : i32
    %c0_i32_2 = arith.constant 0 : i32
    return %arg0, %c0_i32, %c0_i32_0, %c0_i32_1 : i32, i32, i32, i32
  }
  func.func @transform_3(%arg0: i32) -> (i32, i32, i32, i32) {
    %c0_i32 = arith.constant 0 : i32
    %c0_i32_0 = arith.constant 0 : i32
    %c0_i32_1 = arith.constant 0 : i32
    %c0_i32_2 = arith.constant 0 : i32
    return %arg0, %c0_i32, %c0_i32_0, %c0_i32_1 : i32, i32, i32, i32
  }
}

</mosaic_0001>

<llo_original>
// kernel: tpu_custom_call.1
$region0: #{tpu_custom_call.1}
  #allocation0 [shape = 'u32[]', space=smem, size = 0x4, offset = 0x4, fixed_abs, tag = 'smem constant byte address 0x4 - core index']
  #allocation1 [shape = 'u32[144,128]{1,0:T(1,128)}', space=vmem, size = 0x12000, scoped, tag = 'internal scratch']
  %s0 = inlined_call_operand.hbm [shape: f32[2,4,16,16], index: 0, kind: input, shape index: {}]
  %s1 = inlined_call_operand.hbm [shape: f32[2,4,16,16], index: 1, kind: input, shape index: {}]
  %s2 = inlined_call_operand.hbm [shape: f32[2,4,16,16], index: 2, kind: input, shape index: {}]
  %s3 = inlined_call_operand.hbm [shape: f32[2,4,16,16], index: 3, kind: output, shape index: {}]
  %s4 = sld [smem:[#allocation0]]
  $region57: #{tpu_custom_call.1} parent=0
    _
  %s6 = ssub.s32 1, %s4
  %s7 = scalar_select 0, %s6, %s4
  $region1: #{tpu_custom_call.1} parent=0
    #allocation2 [shape = 'u8[65536]{0}', space=vmem, size = 0x10000, scoped, tag = 'input window, operand 0']
    #allocation3 [shape = 's32[2]{0}', space=sflag, size = 0x8, scoped, tag = 'scoped memory for tpu_custom_call.1']
    #allocation4 [shape = 's32[2]{0}', space=sflag, size = 0x8, scoped, tag = 'scoped memory for tpu_custom_call.1']
    #allocation5 [shape = 'u8[65536]{0}', space=vmem, size = 0x10000, scoped, tag = 'input window, operand 1']
    #allocation6 [shape = 's32[2]{0}', space=sflag, size = 0x8, scoped, tag = 'scoped memory for tpu_custom_call.1']
    #allocation7 [shape = 'u8[65536]{0}', space=vmem, size = 0x10000, scoped, tag = 'input window, operand 2']
    #allocation8 [shape = 'u8[65536]{0}', space=vmem, size = 0x10000, scoped, tag = 'output window, operand 0']
    %8 = vsyncpa [#allocation3], 0
    %s9 = scalar_lea.sflag [#allocation3], 1
    %10 = vsyncpa %s9, 0
    %11 = vsyncpa [#allocation6], 0
    %s12 = scalar_lea.sflag [#allocation6], 1
    %13 = vsyncpa %s12, 0
    %14 = vsyncpa [#allocation4], 0
    %s15 = scalar_lea.sflag [#allocation4], 1
    %16 = vsyncpa %s15, 0
    loop: start=0, step=1, limit=4
    $region2: #{tpu_custom_call.1} parent=1 // loop_pre_header
      _
    $region3: #{tpu_custom_call.1} parent=1 // loop_header
      %s18 = sphi 0, %s22
      %p19 = scmp.ge.s32.totalorder %s18, 4
      %s28 = sphi 0, %s30
      %s31 = sphi 0, %s28
      %s32 = sphi 0, %s31
      %s48 = sphi 0, %s32
      %s54 = sphi 0, %s56
      %s57 = sphi 0, %s54
      %s58 = sphi 0, %s57
      %s74 = sphi 0, %s58
      %s80 = sphi 0, %s82
      %s83 = sphi 0, %s80
      %s84 = sphi 0, %s83
      %s100 = sphi 0, %s84
      %s106 = sphi 0, %s108
      %s109 = sphi 0, %s106
      %s110 = sphi 0, %s109
      %s126 = sphi 0, %s110
    $region4: #{tpu_custom_call.1} parent=1 // loop_header_branch
      %21 = sbr.rel (%p19) target = $region8
    $region5: #{tpu_custom_call.1} parent=1 // loop_body
      %s23 = ssub.s32 %s18, 1
      %s24 = ssub.s32 %s18, 2
      %s25 = sadd.s32 %s18, 1
      %s26 = ssub.s32 %s18, %s25
      %p27 = scmp.eq.s32.totalorder %s26, 0
      %s29 = sadd.s32 %s28, 1
      %s30 = scalar_select %p27, %s28, %s29
      %p33 = pneg %p27
      %p34 = scmp.eq.s32.totalorder %s18, 1
      %p35 = por %p33, %p34
      %p36 = scmp.ne.s32.totalorder %s28, %s31
      %p37 = scmp.eq.s32.totalorder %s18, 0
      %p38 = por %p36, %p37
      %p39 = scmp.ne.s32.totalorder %s28, %s31
      %p40 = scmp.eq.s32.totalorder %s23, 1
      %p41 = por %p39, %p40
      %p42 = scmp.ne.s32.totalorder %s31, %s32
      %p43 = scmp.eq.s32.totalorder %s23, 0
      %p44 = por %p42, %p43
      %p45 = scmp.ne.s32.totalorder %s31, %s32
      %p46 = scmp.eq.s32.totalorder %s24, 1
      %p47 = por %p45, %p46
      %p49 = scmp.ne.s32.totalorder %s32, %s48
      %p50 = scmp.eq.s32.totalorder %s24, 0
      %p51 = por %p49, %p50
      %s52 = ssub.s32 %s18, %s25
      %p53 = scmp.eq.s32.totalorder %s52, 0
      %s55 = sadd.s32 %s54, 1
      %s56 = scalar_select %p53, %s54, %s55
      %p59 = pneg %p53
      %p60 = scmp.eq.s32.totalorder %s18, 1
      %p61 = por %p59, %p60
      %p62 = scmp.ne.s32.totalorder %s54, %s57
      %p63 = scmp.eq.s32.totalorder %s18, 0
      %p64 = por %p62, %p63
      %p65 = scmp.ne.s32.totalorder %s54, %s57
      %p66 = scmp.eq.s32.totalorder %s23, 1
      %p67 = por %p65, %p66
      %p68 = scmp.ne.s32.totalorder %s57, %s58
      %p69 = scmp.eq.s32.totalorder %s23, 0
      %p70 = por %p68, %p69
      %p71 = scmp.ne.s32.totalorder %s57, %s58
      %p72 = scmp.eq.s32.totalorder %s24, 1
      %p73 = por %p71, %p72
      %p75 = scmp.ne.s32.totalorder %s58, %s74
      %p76 = scmp.eq.s32.totalorder %s24, 0
      %p77 = por %p75, %p76
      %s78 = ssub.s32 %s18, %s25
      %p79 = scmp.eq.s32.totalorder %s78, 0
      %s81 = sadd.s32 %s80, 1
      %s82 = scalar_select %p79, %s80, %s81
      %p85 = pneg %p79
      %p86 = scmp.eq.s32.totalorder %s18, 1
      %p87 = por %p85, %p86
      %p88 = scmp.ne.s32.totalorder %s80, %s83
      %p89 = scmp.eq.s32.totalorder %s18, 0
      %p90 = por %p88, %p89
      %p91 = scmp.ne.s32.totalorder %s80, %s83
      %p92 = scmp.eq.s32.totalorder %s23, 1
      %p93 = por %p91, %p92
      %p94 = scmp.ne.s32.totalorder %s83, %s84
      %p95 = scmp.eq.s32.totalorder %s23, 0
      %p96 = por %p94, %p95
      %p97 = scmp.ne.s32.totalorder %s83, %s84
      %p98 = scmp.eq.s32.totalorder %s24, 1
      %p99 = por %p97, %p98
      %p101 = scmp.ne.s32.totalorder %s84, %s100
      %p102 = scmp.eq.s32.totalorder %s24, 0
      %p103 = por %p101, %p102
      %s104 = ssub.s32 %s18, %s25
      %p105 = scmp.eq.s32.totalorder %s104, 0
      %s107 = sadd.s32 %s106, 1
      %s108 = scalar_select %p105, %s106, %s107
      %p111 = pneg %p105
      %p112 = scmp.eq.s32.totalorder %s18, 1
      %p113 = por %p111, %p112
      %p114 = scmp.ne.s32.totalorder %s106, %s109
      %p115 = scmp.eq.s32.totalorder %s18, 0
      %p116 = por %p114, %p115
      %p117 = scmp.ne.s32.totalorder %s106, %s109
      %p118 = scmp.eq.s32.totalorder %s23, 1
      %p119 = por %p117, %p118
      %p120 = scmp.ne.s32.totalorder %s109, %s110
      %p121 = scmp.eq.s32.totalorder %s23, 0
      %p122 = por %p120, %p121
      %p123 = scmp.ne.s32.totalorder %s109, %s110
      %p124 = scmp.eq.s32.totalorder %s24, 1
      %p125 = por %p123, %p124
      %p127 = scmp.ne.s32.totalorder %s110, %s126
      %p128 = scmp.eq.s32.totalorder %s24, 0
      %p129 = por %p127, %p128
      %p130 = scmp.le.s32.totalorder 1, %s18
      %p131 = scmp.lt.s32.totalorder %s18, 3
      %p132 = pnand %p130, %p131
      %p133 = pneg %p132
      // Predicated region
      $region9: #{tpu_custom_call.1} parent=5 // pred_check
        _
      $region10: #{tpu_custom_call.1} parent=5 // pred_check_branch
        %135 = sbr.rel (%p132) target = $region12
      $region11: #{tpu_custom_call.1} parent=5 // pred_region
        %s136 = ssub.s32 %s18, 1
      $region12: #{tpu_custom_call.1} parent=5 // pred_fallthru
        _
      %p137 = scmp.lt.s32.totalorder %s18, 2
      // Predicated region
      $region13: #{tpu_custom_call.1} parent=5 // pred_check
        %p138 = pneg %p137
      $region14: #{tpu_custom_call.1} parent=5 // pred_check_branch
        %140 = sbr.rel (%p138) target = $region16
      $region15: #{tpu_custom_call.1} parent=5 // pred_region
        // Predicated region
        $region17: #{tpu_custom_call.1} parent=15 // pred_check
          %p141 = pneg %p38
        $region18: #{tpu_custom_call.1} parent=15 // pred_check_branch
          %143 = sbr.rel (%p141) target = $region20
        $region19: #{tpu_custom_call.1} parent=15 // pred_region
          %s144 = sand.u32 %s28, 1
          %s145 = scalar_lea.sflag [#allocation3], %s144
          %s146 = sand.u32 %s28, 1
          %s147 = smul.addr %s146, 64
          %s148 = scalar_lea.vmem [#allocation2], %s147
          %s150 = ssub.s32 1024, 1024
          %151 = vsyncadd %s145, %s150
          %s152 = smul.addr %s18, 8
          %s153 = smul.addr %s152, 128
          %s154 = scalar_lea.hbm %s0, %s153
          %s155 = sshll.u32 %s148, 4
          %s156 = int_to_ptr.vmem [resolvable:$true] %s155
          %161 = dma.hbm_to_vmem [thread:$0]  %s154, 1024, %s156, %s145, 128, 128, 8
        $region20: #{tpu_custom_call.1} parent=15 // pred_fallthru
          _
        // Predicated region
        $region21: #{tpu_custom_call.1} parent=15 // pred_check
          %p162 = pneg %p64
        $region22: #{tpu_custom_call.1} parent=15 // pred_check_branch
          %164 = sbr.rel (%p162) target = $region24
        $region23: #{tpu_custom_call.1} parent=15 // pred_region
          %s165 = sand.u32 %s18, 1
          %s166 = scalar_lea.sflag [#allocation6], %s165
          %s167 = sand.u32 %s54, 1
          %s168 = smul.addr %s167, 64
          %s169 = scalar_lea.vmem [#allocation5], %s168
          %s171 = ssub.s32 1024, 1024
          %172 = vsyncadd %s166, %s171
          %s173 = smul.addr %s18, 8
          %s174 = smul.addr %s173, 128
          %s175 = scalar_lea.hbm %s1, %s174
          %s176 = sshll.u32 %s169, 4
          %s177 = int_to_ptr.vmem [resolvable:$true] %s176
          %182 = dma.hbm_to_vmem [thread:$0]  %s175, 1024, %s177, %s166, 128, 128, 8
        $region24: #{tpu_custom_call.1} parent=15 // pred_fallthru
          _
        // Predicated region
        $region25: #{tpu_custom_call.1} parent=15 // pred_check
          %p183 = pneg %p90
        $region26: #{tpu_custom_call.1} parent=15 // pred_check_branch
          %185 = sbr.rel (%p183) target = $region28
        $region27: #{tpu_custom_call.1} parent=15 // pred_region
          %s186 = sand.u32 %s18, 1
          %s187 = scalar_lea.sflag [#allocation6], %s186
          %s188 = sand.u32 %s80, 1
          %s189 = smul.addr %s188, 64
          %s190 = scalar_lea.vmem [#allocation7], %s189
          %s192 = ssub.s32 1024, 1024
          %193 = vsyncadd %s187, %s192
          %s194 = smul.addr %s18, 8
          %s195 = smul.addr %s194, 128
          %s196 = scalar_lea.hbm %s2, %s195
          %s197 = sshll.u32 %s190, 4
          %s198 = int_to_ptr.vmem [resolvable:$true] %s197
          %203 = dma.hbm_to_vmem [thread:$0]  %s196, 1024, %s198, %s187, 128, 128, 8
        $region28: #{tpu_custom_call.1} parent=15 // pred_fallthru
          _
      $region16: #{tpu_custom_call.1} parent=5 // pred_fallthru
        _
      %p204 = scmp.le.s32.totalorder 1, %s18
      %p205 = scmp.lt.s32.totalorder %s18, 3
      %p206 = pnand %p204, %p205
      %p207 = pneg %p206
      // Predicated region
      $region29: #{tpu_custom_call.1} parent=5 // pred_check
        _
      $region30: #{tpu_custom_call.1} parent=5 // pred_check_branch
        %209 = sbr.rel (%p206) target = $region32
      $region31: #{tpu_custom_call.1} parent=5 // pred_region
        %s210 = ssub.s32 %s18, 1
        %s211 = sand.u32 %s31, 1
        %s212 = scalar_lea.sflag [#allocation3], %s211
        %s213 = sand.u32 %s31, 1
        %s214 = smul.addr %s213, 64
        %s215 = scalar_lea.vmem [#allocation2], %s214
        // Predicated region
        $region33: #{tpu_custom_call.1} parent=31 // pred_check
          %p216 = pneg %p44
        $region34: #{tpu_custom_call.1} parent=31 // pred_check_branch
          %218 = sbr.rel (%p216) target = $region36
        $region35: #{tpu_custom_call.1} parent=31 // pred_region
          %219 = dma.done %s212, 1024
        $region36: #{tpu_custom_call.1} parent=31 // pred_fallthru
          _
        %s220 = sand.u32 %s23, 1
        %s221 = scalar_lea.sflag [#allocation6], %s220
        %s222 = sand.u32 %s57, 1
        %s223 = smul.addr %s222, 64
        %s224 = scalar_lea.vmem [#allocation5], %s223
        // Predicated region
        $region37: #{tpu_custom_call.1} parent=31 // pred_check
          %p225 = pneg %p70
        $region38: #{tpu_custom_call.1} parent=31 // pred_check_branch
          %227 = sbr.rel (%p225) target = $region40
        $region39: #{tpu_custom_call.1} parent=31 // pred_region
          %228 = dma.done %s221, 1024
        $region40: #{tpu_custom_call.1} parent=31 // pred_fallthru
          _
        %s229 = sand.u32 %s23, 1
        %s230 = scalar_lea.sflag [#allocation6], %s229
        %s231 = sand.u32 %s83, 1
        %s232 = smul.addr %s231, 64
        %s233 = scalar_lea.vmem [#allocation7], %s232
        // Predicated region
        $region41: #{tpu_custom_call.1} parent=31 // pred_check
          %p234 = pneg %p96
        $region42: #{tpu_custom_call.1} parent=31 // pred_check_branch
          %236 = sbr.rel (%p234) target = $region44
        $region43: #{tpu_custom_call.1} parent=31 // pred_region
          %237 = dma.done %s230, 1024
        $region44: #{tpu_custom_call.1} parent=31 // pred_fallthru
          _
        %s238 = sand.u32 %s31, 1
        %s239 = scalar_lea.sflag [#allocation3], %s238
        %s240 = sand.u32 %s31, 1
        %s241 = smul.addr %s240, 64
        %s242 = scalar_lea.vmem [#allocation2], %s241
        %p243 = pneg %p44
        %p244 = pneg %p41
        %s245 = sand.u32 %s23, 1
        %s246 = scalar_lea.sflag [#allocation6], %s245
        %s247 = sand.u32 %s57, 1
        %s248 = smul.addr %s247, 64
        %s249 = scalar_lea.vmem [#allocation5], %s248
        %p250 = pneg %p70
        %p251 = pneg %p67
        %s252 = sand.u32 %s23, 1
        %s253 = scalar_lea.sflag [#allocation6], %s252
        %s254 = sand.u32 %s83, 1
        %s255 = smul.addr %s254, 64
        %s256 = scalar_lea.vmem [#allocation7], %s255
        %p257 = pneg %p96
        %p258 = pneg %p93
        %p259 = pneg %p122
        %p260 = pneg %p119
        %s261 = sand.u32 %s109, 1
        %s262 = scalar_lea.sflag [#allocation4], %s261
        %s263 = sand.u32 %s109, 1
        %s264 = smul.addr %s263, 64
        %s265 = scalar_lea.vmem [#allocation8], %s264
        %v266 = vld [vmem:[%s215] sm:$0xff]
        %v267 = vld [vmem:[%s215 + $0x8] sm:$0xff]
        %v268 = vld [vmem:[%s215 + $0x10] sm:$0xff]
        %v269 = vld [vmem:[%s215 + $0x18] sm:$0xff]
        %v270 = vld [vmem:[%s215 + $0x20] sm:$0xff]
        %v271 = vld [vmem:[%s215 + $0x28] sm:$0xff]
        %v272 = vld [vmem:[%s215 + $0x30] sm:$0xff]
        %v273 = vld [vmem:[%s215 + $0x38] sm:$0xff]
        %v274 = vld [vmem:[%s224] sm:$0xff]
        %v275 = vld [vmem:[%s224 + $0x8] sm:$0xff]
        %v276 = vld [vmem:[%s224 + $0x10] sm:$0xff]
        %v277 = vld [vmem:[%s224 + $0x18] sm:$0xff]
        %v278 = vld [vmem:[%s224 + $0x20] sm:$0xff]
        %v279 = vld [vmem:[%s224 + $0x28] sm:$0xff]
        %v280 = vld [vmem:[%s224 + $0x30] sm:$0xff]
        %v281 = vld [vmem:[%s224 + $0x38] sm:$0xff]
        %v282 = vld [vmem:[%s233] sm:$0xff]
        %v283 = vld [vmem:[%s233 + $0x8] sm:$0xff]
        %v284 = vld [vmem:[%s233 + $0x10] sm:$0xff]
        %v285 = vld [vmem:[%s233 + $0x18] sm:$0xff]
        %v286 = vld [vmem:[%s233 + $0x20] sm:$0xff]
        %v287 = vld [vmem:[%s233 + $0x28] sm:$0xff]
        %v288 = vld [vmem:[%s233 + $0x30] sm:$0xff]
        %v289 = vld [vmem:[%s233 + $0x38] sm:$0xff]
        %v292 = vcombine.high %v266, %v266
        %v294 = vunpack.c.l.s4 1966171168
        %v295 = vunpack.c.0.s8 %v294
        %v296 = vlaneseq
        %v297 = vshrl.u32 %v296, 7
        %v298 = vsub.s32 %v295, %v297
        %v299 = vrot.slane %v266, %v298
        %v301 = vunpack.c.l.s4 1966171168
        %v302 = vunpack.c.0.s8 %v301
        %v303 = vlaneseq
        %v304 = vshrl.u32 %v303, 7
        %v305 = vsub.s32 %v302, %v304
        %v306 = vrot.slane %v292, %v305
        %v307 = vcombine.high %v299, %v299
        %v308 = vcombine.high %v306, %v306
        %v310 = vunpack.c.l.s4 1966171168
        %v311 = vunpack.c.0.s8 %v310
        %v312 = vlaneseq
        %v313 = vshrl.u32 %v312, 7
        %v314 = vsub.s32 %v311, %v313
        %v315 = vrot.slane %v299, %v314
        %v317 = vunpack.c.l.s4 1966171168
        %v318 = vunpack.c.0.s8 %v317
        %v319 = vlaneseq
        %v320 = vshrl.u32 %v319, 7
        %v321 = vsub.s32 %v318, %v320
        %v322 = vrot.slane %v306, %v321
        %v324 = vunpack.c.l.s4 1966171168
        %v325 = vunpack.c.0.s8 %v324
        %v326 = vlaneseq
        %v327 = vshrl.u32 %v326, 7
        %v328 = vsub.s32 %v325, %v327
        %v329 = vrot.slane %v307, %v328
        %v331 = vunpack.c.l.s4 1966171168
        %v332 = vunpack.c.0.s8 %v331
        %v333 = vlaneseq
        %v334 = vshrl.u32 %v333, 7
        %v335 = vsub.s32 %v332, %v334
        %v336 = vrot.slane %v308, %v335
        %v337 = vcombine.high %v315, %v315
        %v338 = vcombine.high %v322, %v322
        %v339 = vcombine.high %v329, %v329
        %v340 = vcombine.high %v336, %v336
        %v341 = vcombine.high %v267, %v267
        %v343 = vunpack.c.l.s4 1966171168
        %v344 = vunpack.c.0.s8 %v343
        %v345 = vlaneseq
        %v346 = vshrl.u32 %v345, 7
        %v347 = vsub.s32 %v344, %v346
        %v348 = vrot.slane %v267, %v347
        %v350 = vunpack.c.l.s4 1966171168
        %v351 = vunpack.c.0.s8 %v350
        %v352 = vlaneseq
        %v353 = vshrl.u32 %v352, 7
        %v354 = vsub.s32 %v351, %v353
        %v355 = vrot.slane %v341, %v354
        %v356 = vcombine.high %v348, %v348
        %v357 = vcombine.high %v355, %v355
        %v359 = vunpack.c.l.s4 1966171168
        %v360 = vunpack.c.0.s8 %v359
        %v361 = vlaneseq
        %v362 = vshrl.u32 %v361, 7
        %v363 = vsub.s32 %v360, %v362
        %v364 = vrot.slane %v348, %v363
        %v366 = vunpack.c.l.s4 1966171168
        %v367 = vunpack.c.0.s8 %v366
        %v368 = vlaneseq
        %v369 = vshrl.u32 %v368, 7
        %v370 = vsub.s32 %v367, %v369
        %v371 = vrot.slane %v355, %v370
        %v373 = vunpack.c.l.s4 1966171168
        %v374 = vunpack.c.0.s8 %v373
        %v375 = vlaneseq
        %v376 = vshrl.u32 %v375, 7
        %v377 = vsub.s32 %v374, %v376
        %v378 = vrot.slane %v356, %v377
        %v380 = vunpack.c.l.s4 1966171168
        %v381 = vunpack.c.0.s8 %v380
        %v382 = vlaneseq
        %v383 = vshrl.u32 %v382, 7
        %v384 = vsub.s32 %v381, %v383
        %v385 = vrot.slane %v357, %v384
        %v386 = vcombine.high %v364, %v364
        %v387 = vcombine.high %v371, %v371
        %v388 = vcombine.high %v378, %v378
        %v389 = vcombine.high %v385, %v385
        %v390 = vlaneseq
        %v391 = vshrl.u32 %v390, 7
        %v392 = vsub.s32 0, %v391
        %v393 = vrot.slane %v315, %v392
        %v394 = vlaneseq
        %v395 = vshrl.u32 %v394, 7
        %v396 = vsub.s32 0, %v395
        %v397 = vrot.slane %v329, %v396
        %v398 = vlaneseq
        %v399 = vshrl.u32 %v398, 7
        %v400 = vsub.s32 0, %v399
        %v401 = vrot.slane %v337, %v400
        %v402 = vlaneseq
        %v403 = vshrl.u32 %v402, 7
        %v404 = vsub.s32 0, %v403
        %v405 = vrot.slane %v339, %v404
        %v406 = vlaneseq
        %v407 = vshrl.u32 %v406, 7
        %v408 = vsub.s32 0, %v407
        %v409 = vrot.slane %v322, %v408
        %v410 = vlaneseq
        %v411 = vshrl.u32 %v410, 7
        %v412 = vsub.s32 0, %v411
        %v413 = vrot.slane %v336, %v412
        %v414 = vlaneseq
        %v415 = vshrl.u32 %v414, 7
        %v416 = vsub.s32 0, %v415
        %v417 = vrot.slane %v338, %v416
        %v418 = vlaneseq
        %v419 = vshrl.u32 %v418, 7
        %v420 = vsub.s32 0, %v419
        %v421 = vrot.slane %v340, %v420
        %v422 = vlaneseq
        %v423 = vshrl.u32 %v422, 7
        %v424 = vsub.s32 0, %v423
        %v425 = vrot.slane %v364, %v424
        %v426 = vlaneseq
        %v427 = vshrl.u32 %v426, 7
        %v428 = vsub.s32 0, %v427
        %v429 = vrot.slane %v378, %v428
        %v430 = vlaneseq
        %v431 = vshrl.u32 %v430, 7
        %v432 = vsub.s32 0, %v431
        %v433 = vrot.slane %v386, %v432
        %v434 = vlaneseq
        %v435 = vshrl.u32 %v434, 7
        %v436 = vsub.s32 0, %v435
        %v437 = vrot.slane %v388, %v436
        %v438 = vlaneseq
        %v439 = vshrl.u32 %v438, 7
        %v440 = vsub.s32 0, %v439
        %v441 = vrot.slane %v371, %v440
        %v442 = vlaneseq
        %v443 = vshrl.u32 %v442, 7
        %v444 = vsub.s32 0, %v443
        %v445 = vrot.slane %v385, %v444
        %v446 = vlaneseq
        %v447 = vshrl.u32 %v446, 7
        %v448 = vsub.s32 0, %v447
        %v449 = vrot.slane %v387, %v448
        %v450 = vlaneseq
        %v451 = vshrl.u32 %v450, 7
        %v452 = vsub.s32 0, %v451
        %v453 = vrot.slane %v389, %v452
        %v470 = vmul.f32 %v393, %v274
        %v471 = vmul.f32 %v393, %v275
        %v472 = vmul.f32 %v397, %v274
        %v473 = vmul.f32 %v397, %v275
        %v474 = vmul.f32 %v401, %v274
        %v475 = vmul.f32 %v401, %v275
        %v476 = vmul.f32 %v405, %v274
        %v477 = vmul.f32 %v405, %v275
        %v478 = vmul.f32 %v409, %v274
        %v479 = vmul.f32 %v409, %v275
        %v480 = vmul.f32 %v413, %v274
        %v481 = vmul.f32 %v413, %v275
        %v482 = vmul.f32 %v417, %v274
        %v483 = vmul.f32 %v417, %v275
        %v484 = vmul.f32 %v421, %v274
        %v485 = vmul.f32 %v421, %v275
        %v486 = vmul.f32 %v425, %v274
        %v487 = vmul.f32 %v425, %v275
        %v488 = vmul.f32 %v429, %v274
        %v489 = vmul.f32 %v429, %v275
        %v490 = vmul.f32 %v433, %v274
        %v491 = vmul.f32 %v433, %v275
        %v492 = vmul.f32 %v437, %v274
        %v493 = vmul.f32 %v437, %v275
        %v494 = vmul.f32 %v441, %v274
        %v495 = vmul.f32 %v441, %v275
        %v496 = vmul.f32 %v445, %v274
        %v497 = vmul.f32 %v445, %v275
        %v498 = vmul.f32 %v449, %v274
        %v499 = vmul.f32 %v449, %v275
        %v500 = vmul.f32 %v453, %v274
        %v501 = vmul.f32 %v453, %v275
        %v504 = vcombine.high %v268, %v268
        %v506 = vunpack.c.l.s4 1966171168
        %v507 = vunpack.c.0.s8 %v506
        %v508 = vlaneseq
        %v509 = vshrl.u32 %v508, 7
        %v510 = vsub.s32 %v507, %v509
        %v511 = vrot.slane %v268, %v510
        %v513 = vunpack.c.l.s4 1966171168
        %v514 = vunpack.c.0.s8 %v513
        %v515 = vlaneseq
        %v516 = vshrl.u32 %v515, 7
        %v517 = vsub.s32 %v514, %v516
        %v518 = vrot.slane %v504, %v517
        %v519 = vcombine.high %v511, %v511
        %v520 = vcombine.high %v518, %v518
        %v522 = vunpack.c.l.s4 1966171168
        %v523 = vunpack.c.0.s8 %v522
        %v524 = vlaneseq
        %v525 = vshrl.u32 %v524, 7
        %v526 = vsub.s32 %v523, %v525
        %v527 = vrot.slane %v511, %v526
        %v529 = vunpack.c.l.s4 1966171168
        %v530 = vunpack.c.0.s8 %v529
        %v531 = vlaneseq
        %v532 = vshrl.u32 %v531, 7
        %v533 = vsub.s32 %v530, %v532
        %v534 = vrot.slane %v518, %v533
        %v536 = vunpack.c.l.s4 1966171168
        %v537 = vunpack.c.0.s8 %v536
        %v538 = vlaneseq
        %v539 = vshrl.u32 %v538, 7
        %v540 = vsub.s32 %v537, %v539
        %v541 = vrot.slane %v519, %v540
        %v543 = vunpack.c.l.s4 1966171168
        %v544 = vunpack.c.0.s8 %v543
        %v545 = vlaneseq
        %v546 = vshrl.u32 %v545, 7
        %v547 = vsub.s32 %v544, %v546
        %v548 = vrot.slane %v520, %v547
        %v549 = vcombine.high %v527, %v527
        %v550 = vcombine.high %v534, %v534
        %v551 = vcombine.high %v541, %v541
        %v552 = vcombine.high %v548, %v548
        %v553 = vcombine.high %v269, %v269
        %v555 = vunpack.c.l.s4 1966171168
        %v556 = vunpack.c.0.s8 %v555
        %v557 = vlaneseq
        %v558 = vshrl.u32 %v557, 7
        %v559 = vsub.s32 %v556, %v558
        %v560 = vrot.slane %v269, %v559
        %v562 = vunpack.c.l.s4 1966171168
        %v563 = vunpack.c.0.s8 %v562
        %v564 = vlaneseq
        %v565 = vshrl.u32 %v564, 7
        %v566 = vsub.s32 %v563, %v565
        %v567 = vrot.slane %v553, %v566
        %v568 = vcombine.high %v560, %v560
        %v569 = vcombine.high %v567, %v567
        %v571 = vunpack.c.l.s4 1966171168
        %v572 = vunpack.c.0.s8 %v571
        %v573 = vlaneseq
        %v574 = vshrl.u32 %v573, 7
        %v575 = vsub.s32 %v572, %v574
        %v576 = vrot.slane %v560, %v575
        %v578 = vunpack.c.l.s4 1966171168
        %v579 = vunpack.c.0.s8 %v578
        %v580 = vlaneseq
        %v581 = vshrl.u32 %v580, 7
        %v582 = vsub.s32 %v579, %v581
        %v583 = vrot.slane %v567, %v582
        %v585 = vunpack.c.l.s4 1966171168
        %v586 = vunpack.c.0.s8 %v585
        %v587 = vlaneseq
        %v588 = vshrl.u32 %v587, 7
        %v589 = vsub.s32 %v586, %v588
        %v590 = vrot.slane %v568, %v589
        %v592 = vunpack.c.l.s4 1966171168
        %v593 = vunpack.c.0.s8 %v592
        %v594 = vlaneseq
        %v595 = vshrl.u32 %v594, 7
        %v596 = vsub.s32 %v593, %v595
        %v597 = vrot.slane %v569, %v596
        %v598 = vcombine.high %v576, %v576
        %v599 = vcombine.high %v583, %v583
        %v600 = vcombine.high %v590, %v590
        %v601 = vcombine.high %v597, %v597
        %v602 = vlaneseq
        %v603 = vshrl.u32 %v602, 7
        %v604 = vsub.s32 0, %v603
        %v605 = vrot.slane %v527, %v604
        %v606 = vlaneseq
        %v607 = vshrl.u32 %v606, 7
        %v608 = vsub.s32 0, %v607
        %v609 = vrot.slane %v541, %v608
        %v610 = vlaneseq
        %v611 = vshrl.u32 %v610, 7
        %v612 = vsub.s32 0, %v611
        %v613 = vrot.slane %v549, %v612
        %v614 = vlaneseq
        %v615 = vshrl.u32 %v614, 7
        %v616 = vsub.s32 0, %v615
        %v617 = vrot.slane %v551, %v616
        %v618 = vlaneseq
        %v619 = vshrl.u32 %v618, 7
        %v620 = vsub.s32 0, %v619
        %v621 = vrot.slane %v534, %v620
        %v622 = vlaneseq
        %v623 = vshrl.u32 %v622, 7
        %v624 = vsub.s32 0, %v623
        %v625 = vrot.slane %v548, %v624
        %v626 = vlaneseq
        %v627 = vshrl.u32 %v626, 7
        %v628 = vsub.s32 0, %v627
        %v629 = vrot.slane %v550, %v628
        %v630 = vlaneseq
        %v631 = vshrl.u32 %v630, 7
        %v632 = vsub.s32 0, %v631
        %v633 = vrot.slane %v552, %v632
        %v634 = vlaneseq
        %v635 = vshrl.u32 %v634, 7
        %v636 = vsub.s32 0, %v635
        %v637 = vrot.slane %v576, %v636
        %v638 = vlaneseq
        %v639 = vshrl.u32 %v638, 7
        %v640 = vsub.s32 0, %v639
        %v641 = vrot.slane %v590, %v640
        %v642 = vlaneseq
        %v643 = vshrl.u32 %v642, 7
        %v644 = vsub.s32 0, %v643
        %v645 = vrot.slane %v598, %v644
        %v646 = vlaneseq
        %v647 = vshrl.u32 %v646, 7
        %v648 = vsub.s32 0, %v647
        %v649 = vrot.slane %v600, %v648
        %v650 = vlaneseq
        %v651 = vshrl.u32 %v650, 7
        %v652 = vsub.s32 0, %v651
        %v653 = vrot.slane %v583, %v652
        %v654 = vlaneseq
        %v655 = vshrl.u32 %v654, 7
        %v656 = vsub.s32 0, %v655
        %v657 = vrot.slane %v597, %v656
        %v658 = vlaneseq
        %v659 = vshrl.u32 %v658, 7
        %v660 = vsub.s32 0, %v659
        %v661 = vrot.slane %v599, %v660
        %v662 = vlaneseq
        %v663 = vshrl.u32 %v662, 7
        %v664 = vsub.s32 0, %v663
        %v665 = vrot.slane %v601, %v664
        %v682 = vmul.f32 %v605, %v276
        %v683 = vmul.f32 %v605, %v277
        %v684 = vmul.f32 %v609, %v276
        %v685 = vmul.f32 %v609, %v277
        %v686 = vmul.f32 %v613, %v276
        %v687 = vmul.f32 %v613, %v277
        %v688 = vmul.f32 %v617, %v276
        %v689 = vmul.f32 %v617, %v277
        %v690 = vmul.f32 %v621, %v276
        %v691 = vmul.f32 %v621, %v277
        %v692 = vmul.f32 %v625, %v276
        %v693 = vmul.f32 %v625, %v277
        %v694 = vmul.f32 %v629, %v276
        %v695 = vmul.f32 %v629, %v277
        %v696 = vmul.f32 %v633, %v276
        %v697 = vmul.f32 %v633, %v277
        %v698 = vmul.f32 %v637, %v276
        %v699 = vmul.f32 %v637, %v277
        %v700 = vmul.f32 %v641, %v276
        %v701 = vmul.f32 %v641, %v277
        %v702 = vmul.f32 %v645, %v276
        %v703 = vmul.f32 %v645, %v277
        %v704 = vmul.f32 %v649, %v276
        %v705 = vmul.f32 %v649, %v277
        %v706 = vmul.f32 %v653, %v276
        %v707 = vmul.f32 %v653, %v277
        %v708 = vmul.f32 %v657, %v276
        %v709 = vmul.f32 %v657, %v277
        %v710 = vmul.f32 %v661, %v276
        %v711 = vmul.f32 %v661, %v277
        %v712 = vmul.f32 %v665, %v276
        %v713 = vmul.f32 %v665, %v277
        %v714 = vadd.f32 %v470, %v682
        %v715 = vadd.f32 %v471, %v683
        %v716 = vadd.f32 %v472, %v684
        %v717 = vadd.f32 %v473, %v685
        %v718 = vadd.f32 %v474, %v686
        %v719 = vadd.f32 %v475, %v687
        %v720 = vadd.f32 %v476, %v688
        %v721 = vadd.f32 %v477, %v689
        %v722 = vadd.f32 %v478, %v690
        %v723 = vadd.f32 %v479, %v691
        %v724 = vadd.f32 %v480, %v692
        %v725 = vadd.f32 %v481, %v693
        %v726 = vadd.f32 %v482, %v694
        %v727 = vadd.f32 %v483, %v695
        %v728 = vadd.f32 %v484, %v696
        %v729 = vadd.f32 %v485, %v697
        %v730 = vadd.f32 %v486, %v698
        %v731 = vadd.f32 %v487, %v699
        %v732 = vadd.f32 %v488, %v700
        %v733 = vadd.f32 %v489, %v701
        %v734 = vadd.f32 %v490, %v702
        %v735 = vadd.f32 %v491, %v703
        %v736 = vadd.f32 %v492, %v704
        %v737 = vadd.f32 %v493, %v705
        %v738 = vadd.f32 %v494, %v706
        %v739 = vadd.f32 %v495, %v707
        %v740 = vadd.f32 %v496, %v708
        %v741 = vadd.f32 %v497, %v709
        %v742 = vadd.f32 %v498, %v710
        %v743 = vadd.f32 %v499, %v711
        %v744 = vadd.f32 %v500, %v712
        %v745 = vadd.f32 %v501, %v713
        %v748 = vcombine.high %v270, %v270
        %v750 = vunpack.c.l.s4 1966171168
        %v751 = vunpack.c.0.s8 %v750
        %v752 = vlaneseq
        %v753 = vshrl.u32 %v752, 7
        %v754 = vsub.s32 %v751, %v753
        %v755 = vrot.slane %v270, %v754
        %v757 = vunpack.c.l.s4 1966171168
        %v758 = vunpack.c.0.s8 %v757
        %v759 = vlaneseq
        %v760 = vshrl.u32 %v759, 7
        %v761 = vsub.s32 %v758, %v760
        %v762 = vrot.slane %v748, %v761
        %v763 = vcombine.high %v755, %v755
        %v764 = vcombine.high %v762, %v762
        %v766 = vunpack.c.l.s4 1966171168
        %v767 = vunpack.c.0.s8 %v766
        %v768 = vlaneseq
        %v769 = vshrl.u32 %v768, 7
        %v770 = vsub.s32 %v767, %v769
        %v771 = vrot.slane %v755, %v770
        %v773 = vunpack.c.l.s4 1966171168
        %v774 = vunpack.c.0.s8 %v773
        %v775 = vlaneseq
        %v776 = vshrl.u32 %v775, 7
        %v777 = vsub.s32 %v774, %v776
        %v778 = vrot.slane %v762, %v777
        %v780 = vunpack.c.l.s4 1966171168
        %v781 = vunpack.c.0.s8 %v780
        %v782 = vlaneseq
        %v783 = vshrl.u32 %v782, 7
        %v784 = vsub.s32 %v781, %v783
        %v785 = vrot.slane %v763, %v784
        %v787 = vunpack.c.l.s4 1966171168
        %v788 = vunpack.c.0.s8 %v787
        %v789 = vlaneseq
        %v790 = vshrl.u32 %v789, 7
        %v791 = vsub.s32 %v788, %v790
        %v792 = vrot.slane %v764, %v791
        %v793 = vcombine.high %v771, %v771
        %v794 = vcombine.high %v778, %v778
        %v795 = vcombine.high %v785, %v785
        %v796 = vcombine.high %v792, %v792
        %v797 = vcombine.high %v271, %v271
        %v799 = vunpack.c.l.s4 1966171168
        %v800 = vunpack.c.0.s8 %v799
        %v801 = vlaneseq
        %v802 = vshrl.u32 %v801, 7
        %v803 = vsub.s32 %v800, %v802
        %v804 = vrot.slane %v271, %v803
        %v806 = vunpack.c.l.s4 1966171168
        %v807 = vunpack.c.0.s8 %v806
        %v808 = vlaneseq
        %v809 = vshrl.u32 %v808, 7
        %v810 = vsub.s32 %v807, %v809
        %v811 = vrot.slane %v797, %v810
        %v812 = vcombine.high %v804, %v804
        %v813 = vcombine.high %v811, %v811
        %v815 = vunpack.c.l.s4 1966171168
        %v816 = vunpack.c.0.s8 %v815
        %v817 = vlaneseq
        %v818 = vshrl.u32 %v817, 7
        %v819 = vsub.s32 %v816, %v818
        %v820 = vrot.slane %v804, %v819
        %v822 = vunpack.c.l.s4 1966171168
        %v823 = vunpack.c.0.s8 %v822
        %v824 = vlaneseq
        %v825 = vshrl.u32 %v824, 7
        %v826 = vsub.s32 %v823, %v825
        %v827 = vrot.slane %v811, %v826
        %v829 = vunpack.c.l.s4 1966171168
        %v830 = vunpack.c.0.s8 %v829
        %v831 = vlaneseq
        %v832 = vshrl.u32 %v831, 7
        %v833 = vsub.s32 %v830, %v832
        %v834 = vrot.slane %v812, %v833
        %v836 = vunpack.c.l.s4 1966171168
        %v837 = vunpack.c.0.s8 %v836
        %v838 = vlaneseq
        %v839 = vshrl.u32 %v838, 7
        %v840 = vsub.s32 %v837, %v839
        %v841 = vrot.slane %v813, %v840
        %v842 = vcombine.high %v820, %v820
        %v843 = vcombine.high %v827, %v827
        %v844 = vcombine.high %v834, %v834
        %v845 = vcombine.high %v841, %v841
        %v846 = vlaneseq
        %v847 = vshrl.u32 %v846, 7
        %v848 = vsub.s32 0, %v847
        %v849 = vrot.slane %v771, %v848
        %v850 = vlaneseq
        %v851 = vshrl.u32 %v850, 7
        %v852 = vsub.s32 0, %v851
        %v853 = vrot.slane %v785, %v852
        %v854 = vlaneseq
        %v855 = vshrl.u32 %v854, 7
        %v856 = vsub.s32 0, %v855
        %v857 = vrot.slane %v793, %v856
        %v858 = vlaneseq
        %v859 = vshrl.u32 %v858, 7
        %v860 = vsub.s32 0, %v859
        %v861 = vrot.slane %v795, %v860
        %v862 = vlaneseq
        %v863 = vshrl.u32 %v862, 7
        %v864 = vsub.s32 0, %v863
        %v865 = vrot.slane %v778, %v864
        %v866 = vlaneseq
        %v867 = vshrl.u32 %v866, 7
        %v868 = vsub.s32 0, %v867
        %v869 = vrot.slane %v792, %v868
        %v870 = vlaneseq
        %v871 = vshrl.u32 %v870, 7
        %v872 = vsub.s32 0, %v871
        %v873 = vrot.slane %v794, %v872
        %v874 = vlaneseq
        %v875 = vshrl.u32 %v874, 7
        %v876 = vsub.s32 0, %v875
        %v877 = vrot.slane %v796, %v876
        %v878 = vlaneseq
        %v879 = vshrl.u32 %v878, 7
        %v880 = vsub.s32 0, %v879
        %v881 = vrot.slane %v820, %v880
        %v882 = vlaneseq
        %v883 = vshrl.u32 %v882, 7
        %v884 = vsub.s32 0, %v883
        %v885 = vrot.slane %v834, %v884
        %v886 = vlaneseq
        %v887 = vshrl.u32 %v886, 7
        %v888 = vsub.s32 0, %v887
        %v889 = vrot.slane %v842, %v888
        %v890 = vlaneseq
        %v891 = vshrl.u32 %v890, 7
        %v892 = vsub.s32 0, %v891
        %v893 = vrot.slane %v844, %v892
        %v894 = vlaneseq
        %v895 = vshrl.u32 %v894, 7
        %v896 = vsub.s32 0, %v895
        %v897 = vrot.slane %v827, %v896
        %v898 = vlaneseq
        %v899 = vshrl.u32 %v898, 7
        %v900 = vsub.s32 0, %v899
        %v901 = vrot.slane %v841, %v900
        %v902 = vlaneseq
        %v903 = vshrl.u32 %v902, 7
        %v904 = vsub.s32 0, %v903
        %v905 = vrot.slane %v843, %v904
        %v906 = vlaneseq
        %v907 = vshrl.u32 %v906, 7
        %v908 = vsub.s32 0, %v907
        %v909 = vrot.slane %v845, %v908
        %v926 = vmul.f32 %v849, %v278
        %v927 = vmul.f32 %v849, %v279
        %v928 = vmul.f32 %v853, %v278
        %v929 = vmul.f32 %v853, %v279
        %v930 = vmul.f32 %v857, %v278
        %v931 = vmul.f32 %v857, %v279
        %v932 = vmul.f32 %v861, %v278
        %v933 = vmul.f32 %v861, %v279
        %v934 = vmul.f32 %v865, %v278
        %v935 = vmul.f32 %v865, %v279
        %v936 = vmul.f32 %v869, %v278
        %v937 = vmul.f32 %v869, %v279
        %v938 = vmul.f32 %v873, %v278
        %v939 = vmul.f32 %v873, %v279
        %v940 = vmul.f32 %v877, %v278
        %v941 = vmul.f32 %v877, %v279
        %v942 = vmul.f32 %v881, %v278
        %v943 = vmul.f32 %v881, %v279
        %v944 = vmul.f32 %v885, %v278
        %v945 = vmul.f32 %v885, %v279
        %v946 = vmul.f32 %v889, %v278
        %v947 = vmul.f32 %v889, %v279
        %v948 = vmul.f32 %v893, %v278
        %v949 = vmul.f32 %v893, %v279
        %v950 = vmul.f32 %v897, %v278
        %v951 = vmul.f32 %v897, %v279
        %v952 = vmul.f32 %v901, %v278
        %v953 = vmul.f32 %v901, %v279
        %v954 = vmul.f32 %v905, %v278
        %v955 = vmul.f32 %v905, %v279
        %v956 = vmul.f32 %v909, %v278
        %v957 = vmul.f32 %v909, %v279
        %v958 = vadd.f32 %v714, %v926
        %v959 = vadd.f32 %v715, %v927
        %v960 = vadd.f32 %v716, %v928
        %v961 = vadd.f32 %v717, %v929
        %v962 = vadd.f32 %v718, %v930
        %v963 = vadd.f32 %v719, %v931
        %v964 = vadd.f32 %v720, %v932
        %v965 = vadd.f32 %v721, %v933
        %v966 = vadd.f32 %v722, %v934
        %v967 = vadd.f32 %v723, %v935
        %v968 = vadd.f32 %v724, %v936
        %v969 = vadd.f32 %v725, %v937
        %v970 = vadd.f32 %v726, %v938
        %v971 = vadd.f32 %v727, %v939
        %v972 = vadd.f32 %v728, %v940
        %v973 = vadd.f32 %v729, %v941
        %v974 = vadd.f32 %v730, %v942
        %v975 = vadd.f32 %v731, %v943
        %v976 = vadd.f32 %v732, %v944
        %v977 = vadd.f32 %v733, %v945
        %v978 = vadd.f32 %v734, %v946
        %v979 = vadd.f32 %v735, %v947
        %v980 = vadd.f32 %v736, %v948
        %v981 = vadd.f32 %v737, %v949
        %v982 = vadd.f32 %v738, %v950
        %v983 = vadd.f32 %v739, %v951
        %v984 = vadd.f32 %v740, %v952
        %v985 = vadd.f32 %v741, %v953
        %v986 = vadd.f32 %v742, %v954
        %v987 = vadd.f32 %v743, %v955
        %v988 = vadd.f32 %v744, %v956
        %v989 = vadd.f32 %v745, %v957
        %v992 = vcombine.high %v272, %v272
        %v994 = vunpack.c.l.s4 1966171168
        %v995 = vunpack.c.0.s8 %v994
        %v996 = vlaneseq
        %v997 = vshrl.u32 %v996, 7
        %v998 = vsub.s32 %v995, %v997
        %v999 = vrot.slane %v272, %v998
        %v1001 = vunpack.c.l.s4 1966171168
        %v1002 = vunpack.c.0.s8 %v1001
        %v1003 = vlaneseq
        %v1004 = vshrl.u32 %v1003, 7
        %v1005 = vsub.s32 %v1002, %v1004
        %v1006 = vrot.slane %v992, %v1005
        %v1007 = vcombine.high %v999, %v999
        %v1008 = vcombine.high %v1006, %v1006
        %v1010 = vunpack.c.l.s4 1966171168
        %v1011 = vunpack.c.0.s8 %v1010
        %v1012 = vlaneseq
        %v1013 = vshrl.u32 %v1012, 7
        %v1014 = vsub.s32 %v1011, %v1013
        %v1015 = vrot.slane %v999, %v1014
        %v1017 = vunpack.c.l.s4 1966171168
        %v1018 = vunpack.c.0.s8 %v1017
        %v1019 = vlaneseq
        %v1020 = vshrl.u32 %v1019, 7
        %v1021 = vsub.s32 %v1018, %v1020
        %v1022 = vrot.slane %v1006, %v1021
        %v1024 = vunpack.c.l.s4 1966171168
        %v1025 = vunpack.c.0.s8 %v1024
        %v1026 = vlaneseq
        %v1027 = vshrl.u32 %v1026, 7
        %v1028 = vsub.s32 %v1025, %v1027
        %v1029 = vrot.slane %v1007, %v1028
        %v1031 = vunpack.c.l.s4 1966171168
        %v1032 = vunpack.c.0.s8 %v1031
        %v1033 = vlaneseq
        %v1034 = vshrl.u32 %v1033, 7
        %v1035 = vsub.s32 %v1032, %v1034
        %v1036 = vrot.slane %v1008, %v1035
        %v1037 = vcombine.high %v1015, %v1015
        %v1038 = vcombine.high %v1022, %v1022
        %v1039 = vcombine.high %v1029, %v1029
        %v1040 = vcombine.high %v1036, %v1036
        %v1041 = vcombine.high %v273, %v273
        %v1043 = vunpack.c.l.s4 1966171168
        %v1044 = vunpack.c.0.s8 %v1043
        %v1045 = vlaneseq
        %v1046 = vshrl.u32 %v1045, 7
        %v1047 = vsub.s32 %v1044, %v1046
        %v1048 = vrot.slane %v273, %v1047
        %v1050 = vunpack.c.l.s4 1966171168
        %v1051 = vunpack.c.0.s8 %v1050
        %v1052 = vlaneseq
        %v1053 = vshrl.u32 %v1052, 7
        %v1054 = vsub.s32 %v1051, %v1053
        %v1055 = vrot.slane %v1041, %v1054
        %v1056 = vcombine.high %v1048, %v1048
        %v1057 = vcombine.high %v1055, %v1055
        %v1059 = vunpack.c.l.s4 1966171168
        %v1060 = vunpack.c.0.s8 %v1059
        %v1061 = vlaneseq
        %v1062 = vshrl.u32 %v1061, 7
        %v1063 = vsub.s32 %v1060, %v1062
        %v1064 = vrot.slane %v1048, %v1063
        %v1066 = vunpack.c.l.s4 1966171168
        %v1067 = vunpack.c.0.s8 %v1066
        %v1068 = vlaneseq
        %v1069 = vshrl.u32 %v1068, 7
        %v1070 = vsub.s32 %v1067, %v1069
        %v1071 = vrot.slane %v1055, %v1070
        %v1073 = vunpack.c.l.s4 1966171168
        %v1074 = vunpack.c.0.s8 %v1073
        %v1075 = vlaneseq
        %v1076 = vshrl.u32 %v1075, 7
        %v1077 = vsub.s32 %v1074, %v1076
        %v1078 = vrot.slane %v1056, %v1077
        %v1080 = vunpack.c.l.s4 1966171168
        %v1081 = vunpack.c.0.s8 %v1080
        %v1082 = vlaneseq
        %v1083 = vshrl.u32 %v1082, 7
        %v1084 = vsub.s32 %v1081, %v1083
        %v1085 = vrot.slane %v1057, %v1084
        %v1086 = vcombine.high %v1064, %v1064
        %v1087 = vcombine.high %v1071, %v1071
        %v1088 = vcombine.high %v1078, %v1078
        %v1089 = vcombine.high %v1085, %v1085
        %v1090 = vlaneseq
        %v1091 = vshrl.u32 %v1090, 7
        %v1092 = vsub.s32 0, %v1091
        %v1093 = vrot.slane %v1015, %v1092
        %v1094 = vlaneseq
        %v1095 = vshrl.u32 %v1094, 7
        %v1096 = vsub.s32 0, %v1095
        %v1097 = vrot.slane %v1029, %v1096
        %v1098 = vlaneseq
        %v1099 = vshrl.u32 %v1098, 7
        %v1100 = vsub.s32 0, %v1099
        %v1101 = vrot.slane %v1037, %v1100
        %v1102 = vlaneseq
        %v1103 = vshrl.u32 %v1102, 7
        %v1104 = vsub.s32 0, %v1103
        %v1105 = vrot.slane %v1039, %v1104
        %v1106 = vlaneseq
        %v1107 = vshrl.u32 %v1106, 7
        %v1108 = vsub.s32 0, %v1107
        %v1109 = vrot.slane %v1022, %v1108
        %v1110 = vlaneseq
        %v1111 = vshrl.u32 %v1110, 7
        %v1112 = vsub.s32 0, %v1111
        %v1113 = vrot.slane %v1036, %v1112
        %v1114 = vlaneseq
        %v1115 = vshrl.u32 %v1114, 7
        %v1116 = vsub.s32 0, %v1115
        %v1117 = vrot.slane %v1038, %v1116
        %v1118 = vlaneseq
        %v1119 = vshrl.u32 %v1118, 7
        %v1120 = vsub.s32 0, %v1119
        %v1121 = vrot.slane %v1040, %v1120
        %v1122 = vlaneseq
        %v1123 = vshrl.u32 %v1122, 7
        %v1124 = vsub.s32 0, %v1123
        %v1125 = vrot.slane %v1064, %v1124
        %v1126 = vlaneseq
        %v1127 = vshrl.u32 %v1126, 7
        %v1128 = vsub.s32 0, %v1127
        %v1129 = vrot.slane %v1078, %v1128
        %v1130 = vlaneseq
        %v1131 = vshrl.u32 %v1130, 7
        %v1132 = vsub.s32 0, %v1131
        %v1133 = vrot.slane %v1086, %v1132
        %v1134 = vlaneseq
        %v1135 = vshrl.u32 %v1134, 7
        %v1136 = vsub.s32 0, %v1135
        %v1137 = vrot.slane %v1088, %v1136
        %v1138 = vlaneseq
        %v1139 = vshrl.u32 %v1138, 7
        %v1140 = vsub.s32 0, %v1139
        %v1141 = vrot.slane %v1071, %v1140
        %v1142 = vlaneseq
        %v1143 = vshrl.u32 %v1142, 7
        %v1144 = vsub.s32 0, %v1143
        %v1145 = vrot.slane %v1085, %v1144
        %v1146 = vlaneseq
        %v1147 = vshrl.u32 %v1146, 7
        %v1148 = vsub.s32 0, %v1147
        %v1149 = vrot.slane %v1087, %v1148
        %v1150 = vlaneseq
        %v1151 = vshrl.u32 %v1150, 7
        %v1152 = vsub.s32 0, %v1151
        %v1153 = vrot.slane %v1089, %v1152
        %v1170 = vmul.f32 %v1093, %v280
        %v1171 = vmul.f32 %v1093, %v281
        %v1172 = vmul.f32 %v1097, %v280
        %v1173 = vmul.f32 %v1097, %v281
        %v1174 = vmul.f32 %v1101, %v280
        %v1175 = vmul.f32 %v1101, %v281
        %v1176 = vmul.f32 %v1105, %v280
        %v1177 = vmul.f32 %v1105, %v281
        %v1178 = vmul.f32 %v1109, %v280
        %v1179 = vmul.f32 %v1109, %v281
        %v1180 = vmul.f32 %v1113, %v280
        %v1181 = vmul.f32 %v1113, %v281
        %v1182 = vmul.f32 %v1117, %v280
        %v1183 = vmul.f32 %v1117, %v281
        %v1184 = vmul.f32 %v1121, %v280
        %v1185 = vmul.f32 %v1121, %v281
        %v1186 = vmul.f32 %v1125, %v280
        %v1187 = vmul.f32 %v1125, %v281
        %v1188 = vmul.f32 %v1129, %v280
        %v1189 = vmul.f32 %v1129, %v281
        %v1190 = vmul.f32 %v1133, %v280
        %v1191 = vmul.f32 %v1133, %v281
        %v1192 = vmul.f32 %v1137, %v280
        %v1193 = vmul.f32 %v1137, %v281
        %v1194 = vmul.f32 %v1141, %v280
        %v1195 = vmul.f32 %v1141, %v281
        %v1196 = vmul.f32 %v1145, %v280
        %v1197 = vmul.f32 %v1145, %v281
        %v1198 = vmul.f32 %v1149, %v280
        %v1199 = vmul.f32 %v1149, %v281
        %v1200 = vmul.f32 %v1153, %v280
        %v1201 = vmul.f32 %v1153, %v281
        %v1202 = vadd.f32 %v958, %v1170
        %v1203 = vadd.f32 %v959, %v1171
        %v1204 = vadd.f32 %v960, %v1172
        %v1205 = vadd.f32 %v961, %v1173
        %v1206 = vadd.f32 %v962, %v1174
        %v1207 = vadd.f32 %v963, %v1175
        %v1208 = vadd.f32 %v964, %v1176
        %v1209 = vadd.f32 %v965, %v1177
        %v1210 = vadd.f32 %v966, %v1178
        %v1211 = vadd.f32 %v967, %v1179
        %v1212 = vadd.f32 %v968, %v1180
        %v1213 = vadd.f32 %v969, %v1181
        %v1214 = vadd.f32 %v970, %v1182
        %v1215 = vadd.f32 %v971, %v1183
        %v1216 = vadd.f32 %v972, %v1184
        %v1217 = vadd.f32 %v973, %v1185
        %v1218 = vadd.f32 %v974, %v1186
        %v1219 = vadd.f32 %v975, %v1187
        %v1220 = vadd.f32 %v976, %v1188
        %v1221 = vadd.f32 %v977, %v1189
        %v1222 = vadd.f32 %v978, %v1190
        %v1223 = vadd.f32 %v979, %v1191
        %v1224 = vadd.f32 %v980, %v1192
        %v1225 = vadd.f32 %v981, %v1193
        %v1226 = vadd.f32 %v982, %v1194
        %v1227 = vadd.f32 %v983, %v1195
        %v1228 = vadd.f32 %v984, %v1196
        %v1229 = vadd.f32 %v985, %v1197
        %v1230 = vadd.f32 %v986, %v1198
        %v1231 = vadd.f32 %v987, %v1199
        %v1232 = vadd.f32 %v988, %v1200
        %v1233 = vadd.f32 %v989, %v1201
        %v1234 = vmul.f32 %v1202, 0.5
        %v1235 = vmul.f32 %v1203, 0.5
        %v1236 = vmul.f32 %v1204, 0.5
        %v1237 = vmul.f32 %v1205, 0.5
        %v1238 = vmul.f32 %v1206, 0.5
        %v1239 = vmul.f32 %v1207, 0.5
        %v1240 = vmul.f32 %v1208, 0.5
        %v1241 = vmul.f32 %v1209, 0.5
        %v1242 = vmul.f32 %v1210, 0.5
        %v1243 = vmul.f32 %v1211, 0.5
        %v1244 = vmul.f32 %v1212, 0.5
        %v1245 = vmul.f32 %v1213, 0.5
        %v1246 = vmul.f32 %v1214, 0.5
        %v1247 = vmul.f32 %v1215, 0.5
        %v1248 = vmul.f32 %v1216, 0.5
        %v1249 = vmul.f32 %v1217, 0.5
        %v1250 = vmul.f32 %v1218, 0.5
        %v1251 = vmul.f32 %v1219, 0.5
        %v1252 = vmul.f32 %v1220, 0.5
        %v1253 = vmul.f32 %v1221, 0.5
        %v1254 = vmul.f32 %v1222, 0.5
        %v1255 = vmul.f32 %v1223, 0.5
        %v1256 = vmul.f32 %v1224, 0.5
        %v1257 = vmul.f32 %v1225, 0.5
        %v1258 = vmul.f32 %v1226, 0.5
        %v1259 = vmul.f32 %v1227, 0.5
        %v1260 = vmul.f32 %v1228, 0.5
        %v1261 = vmul.f32 %v1229, 0.5
        %v1262 = vmul.f32 %v1230, 0.5
        %v1263 = vmul.f32 %v1231, 0.5
        %v1264 = vmul.f32 %v1232, 0.5
        %v1265 = vmul.f32 %v1233, 0.5
        %vm1266 = vcmask 130048
        %v1267 = vsel %vm1266, %v1234, -inf
        %v1268 = vsel %vm1266, %v1235, -inf
        %v1269 = vmax.f32 %v1267, %v1268
        %v1270 = vrot.slane %v1269, 4
        %v1271 = vmax.f32 %v1269, %v1270
        %v1272 = vrot.slane %v1271, 2
        %v1273 = vmax.f32 %v1271, %v1272
        %v1274 = vrot.slane %v1273, 1
        %v1275 = vmax.f32 %v1273, %v1274
        %v1276 = vsel %vm1266, %v1236, -inf
        %v1277 = vsel %vm1266, %v1237, -inf
        %v1278 = vmax.f32 %v1276, %v1277
        %v1279 = vrot.slane %v1278, 4
        %v1280 = vmax.f32 %v1278, %v1279
        %v1281 = vrot.slane %v1280, 2
        %v1282 = vmax.f32 %v1280, %v1281
        %v1283 = vrot.slane %v1282, 1
        %v1284 = vmax.f32 %v1282, %v1283
        %v1285 = vsel %vm1266, %v1238, -inf
        %v1286 = vsel %vm1266, %v1239, -inf
        %v1287 = vmax.f32 %v1285, %v1286
        %v1288 = vrot.slane %v1287, 4
        %v1289 = vmax.f32 %v1287, %v1288
        %v1290 = vrot.slane %v1289, 2
        %v1291 = vmax.f32 %v1289, %v1290
        %v1292 = vrot.slane %v1291, 1
        %v1293 = vmax.f32 %v1291, %v1292
        %v1294 = vsel %vm1266, %v1240, -inf
        %v1295 = vsel %vm1266, %v1241, -inf
        %v1296 = vmax.f32 %v1294, %v1295
        %v1297 = vrot.slane %v1296, 4
        %v1298 = vmax.f32 %v1296, %v1297
        %v1299 = vrot.slane %v1298, 2
        %v1300 = vmax.f32 %v1298, %v1299
        %v1301 = vrot.slane %v1300, 1
        %v1302 = vmax.f32 %v1300, %v1301
        %v1303 = vsel %vm1266, %v1242, -inf
        %v1304 = vsel %vm1266, %v1243, -inf
        %v1305 = vmax.f32 %v1303, %v1304
        %v1306 = vrot.slane %v1305, 4
        %v1307 = vmax.f32 %v1305, %v1306
        %v1308 = vrot.slane %v1307, 2
        %v1309 = vmax.f32 %v1307, %v1308
        %v1310 = vrot.slane %v1309, 1
        %v1311 = vmax.f32 %v1309, %v1310
        %v1312 = vsel %vm1266, %v1244, -inf
        %v1313 = vsel %vm1266, %v1245, -inf
        %v1314 = vmax.f32 %v1312, %v1313
        %v1315 = vrot.slane %v1314, 4
        %v1316 = vmax.f32 %v1314, %v1315
        %v1317 = vrot.slane %v1316, 2
        %v1318 = vmax.f32 %v1316, %v1317
        %v1319 = vrot.slane %v1318, 1
        %v1320 = vmax.f32 %v1318, %v1319
        %v1321 = vsel %vm1266, %v1246, -inf
        %v1322 = vsel %vm1266, %v1247, -inf
        %v1323 = vmax.f32 %v1321, %v1322
        %v1324 = vrot.slane %v1323, 4
        %v1325 = vmax.f32 %v1323, %v1324
        %v1326 = vrot.slane %v1325, 2
        %v1327 = vmax.f32 %v1325, %v1326
        %v1328 = vrot.slane %v1327, 1
        %v1329 = vmax.f32 %v1327, %v1328
        %v1330 = vsel %vm1266, %v1248, -inf
        %v1331 = vsel %vm1266, %v1249, -inf
        %v1332 = vmax.f32 %v1330, %v1331
        %v1333 = vrot.slane %v1332, 4
        %v1334 = vmax.f32 %v1332, %v1333
        %v1335 = vrot.slane %v1334, 2
        %v1336 = vmax.f32 %v1334, %v1335
        %v1337 = vrot.slane %v1336, 1
        %v1338 = vmax.f32 %v1336, %v1337
        %v1339 = vsel %vm1266, %v1250, -inf
        %v1340 = vsel %vm1266, %v1251, -inf
        %v1341 = vmax.f32 %v1339, %v1340
        %v1342 = vrot.slane %v1341, 4
        %v1343 = vmax.f32 %v1341, %v1342
        %v1344 = vrot.slane %v1343, 2
        %v1345 = vmax.f32 %v1343, %v1344
        %v1346 = vrot.slane %v1345, 1
        %v1347 = vmax.f32 %v1345, %v1346
        %v1348 = vsel %vm1266, %v1252, -inf
        %v1349 = vsel %vm1266, %v1253, -inf
        %v1350 = vmax.f32 %v1348, %v1349
        %v1351 = vrot.slane %v1350, 4
        %v1352 = vmax.f32 %v1350, %v1351
        %v1353 = vrot.slane %v1352, 2
        %v1354 = vmax.f32 %v1352, %v1353
        %v1355 = vrot.slane %v1354, 1
        %v1356 = vmax.f32 %v1354, %v1355
        %v1357 = vsel %vm1266, %v1254, -inf
        %v1358 = vsel %vm1266, %v1255, -inf
        %v1359 = vmax.f32 %v1357, %v1358
        %v1360 = vrot.slane %v1359, 4
        %v1361 = vmax.f32 %v1359, %v1360
        %v1362 = vrot.slane %v1361, 2
        %v1363 = vmax.f32 %v1361, %v1362
        %v1364 = vrot.slane %v1363, 1
        %v1365 = vmax.f32 %v1363, %v1364
        %v1366 = vsel %vm1266, %v1256, -inf
        %v1367 = vsel %vm1266, %v1257, -inf
        %v1368 = vmax.f32 %v1366, %v1367
        %v1369 = vrot.slane %v1368, 4
        %v1370 = vmax.f32 %v1368, %v1369
        %v1371 = vrot.slane %v1370, 2
        %v1372 = vmax.f32 %v1370, %v1371
        %v1373 = vrot.slane %v1372, 1
        %v1374 = vmax.f32 %v1372, %v1373
        %v1375 = vsel %vm1266, %v1258, -inf
        %v1376 = vsel %vm1266, %v1259, -inf
        %v1377 = vmax.f32 %v1375, %v1376
        %v1378 = vrot.slane %v1377, 4
        %v1379 = vmax.f32 %v1377, %v1378
        %v1380 = vrot.slane %v1379, 2
        %v1381 = vmax.f32 %v1379, %v1380
        %v1382 = vrot.slane %v1381, 1
        %v1383 = vmax.f32 %v1381, %v1382
        %v1384 = vsel %vm1266, %v1260, -inf
        %v1385 = vsel %vm1266, %v1261, -inf
        %v1386 = vmax.f32 %v1384, %v1385
        %v1387 = vrot.slane %v1386, 4
        %v1388 = vmax.f32 %v1386, %v1387
        %v1389 = vrot.slane %v1388, 2
        %v1390 = vmax.f32 %v1388, %v1389
        %v1391 = vrot.slane %v1390, 1
        %v1392 = vmax.f32 %v1390, %v1391
        %v1393 = vsel %vm1266, %v1262, -inf
        %v1394 = vsel %vm1266, %v1263, -inf
        %v1395 = vmax.f32 %v1393, %v1394
        %v1396 = vrot.slane %v1395, 4
        %v1397 = vmax.f32 %v1395, %v1396
        %v1398 = vrot.slane %v1397, 2
        %v1399 = vmax.f32 %v1397, %v1398
        %v1400 = vrot.slane %v1399, 1
        %v1401 = vmax.f32 %v1399, %v1400
        %v1402 = vsel %vm1266, %v1264, -inf
        %v1403 = vsel %vm1266, %v1265, -inf
        %v1404 = vmax.f32 %v1402, %v1403
        %v1405 = vrot.slane %v1404, 4
        %v1406 = vmax.f32 %v1404, %v1405
        %v1407 = vrot.slane %v1406, 2
        %v1408 = vmax.f32 %v1406, %v1407
        %v1409 = vrot.slane %v1408, 1
        %v1410 = vmax.f32 %v1408, %v1409
        %v1411 = vsub.f32 %v1234, %v1275
        %v1412 = vsub.f32 %v1235, %v1275
        %v1413 = vsub.f32 %v1236, %v1284
        %v1414 = vsub.f32 %v1237, %v1284
        %v1415 = vsub.f32 %v1238, %v1293
        %v1416 = vsub.f32 %v1239, %v1293
        %v1417 = vsub.f32 %v1240, %v1302
        %v1418 = vsub.f32 %v1241, %v1302
        %v1419 = vsub.f32 %v1242, %v1311
        %v1420 = vsub.f32 %v1243, %v1311
        %v1421 = vsub.f32 %v1244, %v1320
        %v1422 = vsub.f32 %v1245, %v1320
        %v1423 = vsub.f32 %v1246, %v1329
        %v1424 = vsub.f32 %v1247, %v1329
        %v1425 = vsub.f32 %v1248, %v1338
        %v1426 = vsub.f32 %v1249, %v1338
        %v1427 = vsub.f32 %v1250, %v1347
        %v1428 = vsub.f32 %v1251, %v1347
        %v1429 = vsub.f32 %v1252, %v1356
        %v1430 = vsub.f32 %v1253, %v1356
        %v1431 = vsub.f32 %v1254, %v1365
        %v1432 = vsub.f32 %v1255, %v1365
        %v1433 = vsub.f32 %v1256, %v1374
        %v1434 = vsub.f32 %v1257, %v1374
        %v1435 = vsub.f32 %v1258, %v1383
        %v1436 = vsub.f32 %v1259, %v1383
        %v1437 = vsub.f32 %v1260, %v1392
        %v1438 = vsub.f32 %v1261, %v1392
        %v1439 = vsub.f32 %v1262, %v1401
        %v1440 = vsub.f32 %v1263, %v1401
        %v1441 = vsub.f32 %v1264, %v1410
        %v1442 = vsub.f32 %v1265, %v1410
        %v1443 = vmul.f32 %v1411, 1.442695
        %v1444 = vpow.pop %v1443
        %v1445 = vmul.f32 %v1412, 1.442695
        %v1446 = vpow.pop %v1445
        %v1447 = vmul.f32 %v1413, 1.442695
        %v1448 = vpow.pop %v1447
        %v1449 = vmul.f32 %v1414, 1.442695
        %v1450 = vpow.pop %v1449
        %v1451 = vmul.f32 %v1415, 1.442695
        %v1452 = vpow.pop %v1451
        %v1453 = vmul.f32 %v1416, 1.442695
        %v1454 = vpow.pop %v1453
        %v1455 = vmul.f32 %v1417, 1.442695
        %v1456 = vpow.pop %v1455
        %v1457 = vmul.f32 %v1418, 1.442695
        %v1458 = vpow.pop %v1457
        %v1459 = vmul.f32 %v1419, 1.442695
        %v1460 = vpow.pop %v1459
        %v1461 = vmul.f32 %v1420, 1.442695
        %v1462 = vpow.pop %v1461
        %v1463 = vmul.f32 %v1421, 1.442695
        %v1464 = vpow.pop %v1463
        %v1465 = vmul.f32 %v1422, 1.442695
        %v1466 = vpow.pop %v1465
        %v1467 = vmul.f32 %v1423, 1.442695
        %v1468 = vpow.pop %v1467
        %v1469 = vmul.f32 %v1424, 1.442695
        %v1470 = vpow.pop %v1469
        %v1471 = vmul.f32 %v1425, 1.442695
        %v1472 = vpow.pop %v1471
        %v1473 = vmul.f32 %v1426, 1.442695
        %v1474 = vpow.pop %v1473
        %v1475 = vmul.f32 %v1427, 1.442695
        %v1476 = vpow.pop %v1475
        %v1477 = vmul.f32 %v1428, 1.442695
        %v1478 = vpow.pop %v1477
        %v1479 = vmul.f32 %v1429, 1.442695
        %v1480 = vpow.pop %v1479
        %v1481 = vmul.f32 %v1430, 1.442695
        %v1482 = vpow.pop %v1481
        %v1483 = vmul.f32 %v1431, 1.442695
        %v1484 = vpow.pop %v1483
        %v1485 = vmul.f32 %v1432, 1.442695
        %v1486 = vpow.pop %v1485
        %v1487 = vmul.f32 %v1433, 1.442695
        %v1488 = vpow.pop %v1487
        %v1489 = vmul.f32 %v1434, 1.442695
        %v1490 = vpow.pop %v1489
        %v1491 = vmul.f32 %v1435, 1.442695
        %v1492 = vpow.pop %v1491
        %v1493 = vmul.f32 %v1436, 1.442695
        %v1494 = vpow.pop %v1493
        %v1495 = vmul.f32 %v1437, 1.442695
        %v1496 = vpow.pop %v1495
        %v1497 = vmul.f32 %v1438, 1.442695
        %v1498 = vpow.pop %v1497
        %v1499 = vmul.f32 %v1439, 1.442695
        %v1500 = vpow.pop %v1499
        %v1501 = vmul.f32 %v1440, 1.442695
        %v1502 = vpow.pop %v1501
        %v1503 = vmul.f32 %v1441, 1.442695
        %v1504 = vpow.pop %v1503
        %v1505 = vmul.f32 %v1442, 1.442695
        %v1506 = vpow.pop %v1505
        %v1507 = vsel %vm1266, %v1444, 0.0
        %v1508 = vsel %vm1266, %v1446, 0.0
        %v1509 = vadd.f32 %v1507, %v1508
        %v1510 = vrot.slane %v1509, 4
        %v1511 = vadd.f32 %v1509, %v1510
        %v1512 = vrot.slane %v1511, 2
        %v1513 = vadd.f32 %v1511, %v1512
        %v1514 = vrot.slane %v1513, 1
        %v1515 = vadd.f32 %v1513, %v1514
        %v1516 = vsel %vm1266, %v1448, 0.0
        %v1517 = vsel %vm1266, %v1450, 0.0
        %v1518 = vadd.f32 %v1516, %v1517
        %v1519 = vrot.slane %v1518, 4
        %v1520 = vadd.f32 %v1518, %v1519
        %v1521 = vrot.slane %v1520, 2
        %v1522 = vadd.f32 %v1520, %v1521
        %v1523 = vrot.slane %v1522, 1
        %v1524 = vadd.f32 %v1522, %v1523
        %v1525 = vsel %vm1266, %v1452, 0.0
        %v1526 = vsel %vm1266, %v1454, 0.0
        %v1527 = vadd.f32 %v1525, %v1526
        %v1528 = vrot.slane %v1527, 4
        %v1529 = vadd.f32 %v1527, %v1528
        %v1530 = vrot.slane %v1529, 2
        %v1531 = vadd.f32 %v1529, %v1530
        %v1532 = vrot.slane %v1531, 1
        %v1533 = vadd.f32 %v1531, %v1532
        %v1534 = vsel %vm1266, %v1456, 0.0
        %v1535 = vsel %vm1266, %v1458, 0.0
        %v1536 = vadd.f32 %v1534, %v1535
        %v1537 = vrot.slane %v1536, 4
        %v1538 = vadd.f32 %v1536, %v1537
        %v1539 = vrot.slane %v1538, 2
        %v1540 = vadd.f32 %v1538, %v1539
        %v1541 = vrot.slane %v1540, 1
        %v1542 = vadd.f32 %v1540, %v1541
        %v1543 = vsel %vm1266, %v1460, 0.0
        %v1544 = vsel %vm1266, %v1462, 0.0
        %v1545 = vadd.f32 %v1543, %v1544
        %v1546 = vrot.slane %v1545, 4
        %v1547 = vadd.f32 %v1545, %v1546
        %v1548 = vrot.slane %v1547, 2
        %v1549 = vadd.f32 %v1547, %v1548
        %v1550 = vrot.slane %v1549, 1
        %v1551 = vadd.f32 %v1549, %v1550
        %v1552 = vsel %vm1266, %v1464, 0.0
        %v1553 = vsel %vm1266, %v1466, 0.0
        %v1554 = vadd.f32 %v1552, %v1553
        %v1555 = vrot.slane %v1554, 4
        %v1556 = vadd.f32 %v1554, %v1555
        %v1557 = vrot.slane %v1556, 2
        %v1558 = vadd.f32 %v1556, %v1557
        %v1559 = vrot.slane %v1558, 1
        %v1560 = vadd.f32 %v1558, %v1559
        %v1561 = vsel %vm1266, %v1468, 0.0
        %v1562 = vsel %vm1266, %v1470, 0.0
        %v1563 = vadd.f32 %v1561, %v1562
        %v1564 = vrot.slane %v1563, 4
        %v1565 = vadd.f32 %v1563, %v1564
        %v1566 = vrot.slane %v1565, 2
        %v1567 = vadd.f32 %v1565, %v1566
        %v1568 = vrot.slane %v1567, 1
        %v1569 = vadd.f32 %v1567, %v1568
        %v1570 = vsel %vm1266, %v1472, 0.0
        %v1571 = vsel %vm1266, %v1474, 0.0
        %v1572 = vadd.f32 %v1570, %v1571
        %v1573 = vrot.slane %v1572, 4
        %v1574 = vadd.f32 %v1572, %v1573
        %v1575 = vrot.slane %v1574, 2
        %v1576 = vadd.f32 %v1574, %v1575
        %v1577 = vrot.slane %v1576, 1
        %v1578 = vadd.f32 %v1576, %v1577
        %v1579 = vsel %vm1266, %v1476, 0.0
        %v1580 = vsel %vm1266, %v1478, 0.0
        %v1581 = vadd.f32 %v1579, %v1580
        %v1582 = vrot.slane %v1581, 4
        %v1583 = vadd.f32 %v1581, %v1582
        %v1584 = vrot.slane %v1583, 2
        %v1585 = vadd.f32 %v1583, %v1584
        %v1586 = vrot.slane %v1585, 1
        %v1587 = vadd.f32 %v1585, %v1586
        %v1588 = vsel %vm1266, %v1480, 0.0
        %v1589 = vsel %vm1266, %v1482, 0.0
        %v1590 = vadd.f32 %v1588, %v1589
        %v1591 = vrot.slane %v1590, 4
        %v1592 = vadd.f32 %v1590, %v1591
        %v1593 = vrot.slane %v1592, 2
        %v1594 = vadd.f32 %v1592, %v1593
        %v1595 = vrot.slane %v1594, 1
        %v1596 = vadd.f32 %v1594, %v1595
        %v1597 = vsel %vm1266, %v1484, 0.0
        %v1598 = vsel %vm1266, %v1486, 0.0
        %v1599 = vadd.f32 %v1597, %v1598
        %v1600 = vrot.slane %v1599, 4
        %v1601 = vadd.f32 %v1599, %v1600
        %v1602 = vrot.slane %v1601, 2
        %v1603 = vadd.f32 %v1601, %v1602
        %v1604 = vrot.slane %v1603, 1
        %v1605 = vadd.f32 %v1603, %v1604
        %v1606 = vsel %vm1266, %v1488, 0.0
        %v1607 = vsel %vm1266, %v1490, 0.0
        %v1608 = vadd.f32 %v1606, %v1607
        %v1609 = vrot.slane %v1608, 4
        %v1610 = vadd.f32 %v1608, %v1609
        %v1611 = vrot.slane %v1610, 2
        %v1612 = vadd.f32 %v1610, %v1611
        %v1613 = vrot.slane %v1612, 1
        %v1614 = vadd.f32 %v1612, %v1613
        %v1615 = vsel %vm1266, %v1492, 0.0
        %v1616 = vsel %vm1266, %v1494, 0.0
        %v1617 = vadd.f32 %v1615, %v1616
        %v1618 = vrot.slane %v1617, 4
        %v1619 = vadd.f32 %v1617, %v1618
        %v1620 = vrot.slane %v1619, 2
        %v1621 = vadd.f32 %v1619, %v1620
        %v1622 = vrot.slane %v1621, 1
        %v1623 = vadd.f32 %v1621, %v1622
        %v1624 = vsel %vm1266, %v1496, 0.0
        %v1625 = vsel %vm1266, %v1498, 0.0
        %v1626 = vadd.f32 %v1624, %v1625
        %v1627 = vrot.slane %v1626, 4
        %v1628 = vadd.f32 %v1626, %v1627
        %v1629 = vrot.slane %v1628, 2
        %v1630 = vadd.f32 %v1628, %v1629
        %v1631 = vrot.slane %v1630, 1
        %v1632 = vadd.f32 %v1630, %v1631
        %v1633 = vsel %vm1266, %v1500, 0.0
        %v1634 = vsel %vm1266, %v1502, 0.0
        %v1635 = vadd.f32 %v1633, %v1634
        %v1636 = vrot.slane %v1635, 4
        %v1637 = vadd.f32 %v1635, %v1636
        %v1638 = vrot.slane %v1637, 2
        %v1639 = vadd.f32 %v1637, %v1638
        %v1640 = vrot.slane %v1639, 1
        %v1641 = vadd.f32 %v1639, %v1640
        %v1642 = vsel %vm1266, %v1504, 0.0
        %v1643 = vsel %vm1266, %v1506, 0.0
        %v1644 = vadd.f32 %v1642, %v1643
        %v1645 = vrot.slane %v1644, 4
        %v1646 = vadd.f32 %v1644, %v1645
        %v1647 = vrot.slane %v1646, 2
        %v1648 = vadd.f32 %v1646, %v1647
        %v1649 = vrot.slane %v1648, 1
        %v1650 = vadd.f32 %v1648, %v1649
        %v1651 = vrcp.pop %v1515
        %v1652 = vrcp.pop %v1524
        %v1653 = vrcp.pop %v1533
        %v1654 = vrcp.pop %v1542
        %v1655 = vrcp.pop %v1551
        %v1656 = vrcp.pop %v1560
        %v1657 = vrcp.pop %v1569
        %v1658 = vrcp.pop %v1578
        %v1659 = vrcp.pop %v1587
        %v1660 = vrcp.pop %v1596
        %v1661 = vrcp.pop %v1605
        %v1662 = vrcp.pop %v1614
        %v1663 = vrcp.pop %v1623
        %v1664 = vrcp.pop %v1632
        %v1665 = vrcp.pop %v1641
        %v1666 = vrcp.pop %v1650
        %v1667 = vmul.f32 %v1444, %v1651
        %v1668 = vmul.f32 %v1446, %v1651
        %v1669 = vmul.f32 %v1448, %v1652
        %v1670 = vmul.f32 %v1450, %v1652
        %v1671 = vmul.f32 %v1452, %v1653
        %v1672 = vmul.f32 %v1454, %v1653
        %v1673 = vmul.f32 %v1456, %v1654
        %v1674 = vmul.f32 %v1458, %v1654
        %v1675 = vmul.f32 %v1460, %v1655
        %v1676 = vmul.f32 %v1462, %v1655
        %v1677 = vmul.f32 %v1464, %v1656
        %v1678 = vmul.f32 %v1466, %v1656
        %v1679 = vmul.f32 %v1468, %v1657
        %v1680 = vmul.f32 %v1470, %v1657
        %v1681 = vmul.f32 %v1472, %v1658
        %v1682 = vmul.f32 %v1474, %v1658
        %v1683 = vmul.f32 %v1476, %v1659
        %v1684 = vmul.f32 %v1478, %v1659
        %v1685 = vmul.f32 %v1480, %v1660
        %v1686 = vmul.f32 %v1482, %v1660
        %v1687 = vmul.f32 %v1484, %v1661
        %v1688 = vmul.f32 %v1486, %v1661
        %v1689 = vmul.f32 %v1488, %v1662
        %v1690 = vmul.f32 %v1490, %v1662
        %v1691 = vmul.f32 %v1492, %v1663
        %v1692 = vmul.f32 %v1494, %v1663
        %v1693 = vmul.f32 %v1496, %v1664
        %v1694 = vmul.f32 %v1498, %v1664
        %v1695 = vmul.f32 %v1500, %v1665
        %v1696 = vmul.f32 %v1502, %v1665
        %v1697 = vmul.f32 %v1504, %v1666
        %v1698 = vmul.f32 %v1506, %v1666
        %v1699 = vmul.f32 %v1667, %v282
        %v1700 = vmul.f32 %v1668, %v283
        %v1701 = vmul.f32 %v1669, %v282
        %v1702 = vmul.f32 %v1670, %v283
        %v1703 = vmul.f32 %v1671, %v282
        %v1704 = vmul.f32 %v1672, %v283
        %v1705 = vmul.f32 %v1673, %v282
        %v1706 = vmul.f32 %v1674, %v283
        %v1707 = vmul.f32 %v1675, %v282
        %v1708 = vmul.f32 %v1676, %v283
        %v1709 = vmul.f32 %v1677, %v282
        %v1710 = vmul.f32 %v1678, %v283
        %v1711 = vmul.f32 %v1679, %v282
        %v1712 = vmul.f32 %v1680, %v283
        %v1713 = vmul.f32 %v1681, %v282
        %v1714 = vmul.f32 %v1682, %v283
        %v1715 = vmul.f32 %v1683, %v282
        %v1716 = vmul.f32 %v1684, %v283
        %v1717 = vmul.f32 %v1685, %v282
        %v1718 = vmul.f32 %v1686, %v283
        %v1719 = vmul.f32 %v1687, %v282
        %v1720 = vmul.f32 %v1688, %v283
        %v1721 = vmul.f32 %v1689, %v282
        %v1722 = vmul.f32 %v1690, %v283
        %v1723 = vmul.f32 %v1691, %v282
        %v1724 = vmul.f32 %v1692, %v283
        %v1725 = vmul.f32 %v1693, %v282
        %v1726 = vmul.f32 %v1694, %v283
        %v1727 = vmul.f32 %v1695, %v282
        %v1728 = vmul.f32 %v1696, %v283
        %v1729 = vmul.f32 %v1697, %v282
        %v1730 = vmul.f32 %v1698, %v283
        %v1731 = vsel %vm1266, %v1699, 0.0
        %v1732 = vsel %vm1266, %v1700, 0.0
        %v1733 = vadd.f32 %v1731, %v1732
        %v1734 = vrot.slane %v1733, 4
        %v1735 = vadd.f32 %v1733, %v1734
        %v1736 = vrot.slane %v1735, 2
        %v1737 = vadd.f32 %v1735, %v1736
        %v1738 = vrot.slane %v1737, 1
        %v1739 = vadd.f32 %v1737, %v1738
        %v1740 = vsel %vm1266, %v1701, 0.0
        %v1741 = vsel %vm1266, %v1702, 0.0
        %v1742 = vadd.f32 %v1740, %v1741
        %v1743 = vrot.slane %v1742, 4
        %v1744 = vadd.f32 %v1742, %v1743
        %v1745 = vrot.slane %v1744, 2
        %v1746 = vadd.f32 %v1744, %v1745
        %v1747 = vrot.slane %v1746, 1
        %v1748 = vadd.f32 %v1746, %v1747
        %v1749 = vsel %vm1266, %v1703, 0.0
        %v1750 = vsel %vm1266, %v1704, 0.0
        %v1751 = vadd.f32 %v1749, %v1750
        %v1752 = vrot.slane %v1751, 4
        %v1753 = vadd.f32 %v1751, %v1752
        %v1754 = vrot.slane %v1753, 2
        %v1755 = vadd.f32 %v1753, %v1754
        %v1756 = vrot.slane %v1755, 1
        %v1757 = vadd.f32 %v1755, %v1756
        %v1758 = vsel %vm1266, %v1705, 0.0
        %v1759 = vsel %vm1266, %v1706, 0.0
        %v1760 = vadd.f32 %v1758, %v1759
        %v1761 = vrot.slane %v1760, 4
        %v1762 = vadd.f32 %v1760, %v1761
        %v1763 = vrot.slane %v1762, 2
        %v1764 = vadd.f32 %v1762, %v1763
        %v1765 = vrot.slane %v1764, 1
        %v1766 = vadd.f32 %v1764, %v1765
        %v1767 = vsel %vm1266, %v1707, 0.0
        %v1768 = vsel %vm1266, %v1708, 0.0
        %v1769 = vadd.f32 %v1767, %v1768
        %v1770 = vrot.slane %v1769, 4
        %v1771 = vadd.f32 %v1769, %v1770
        %v1772 = vrot.slane %v1771, 2
        %v1773 = vadd.f32 %v1771, %v1772
        %v1774 = vrot.slane %v1773, 1
        %v1775 = vadd.f32 %v1773, %v1774
        %v1776 = vsel %vm1266, %v1709, 0.0
        %v1777 = vsel %vm1266, %v1710, 0.0
        %v1778 = vadd.f32 %v1776, %v1777
        %v1779 = vrot.slane %v1778, 4
        %v1780 = vadd.f32 %v1778, %v1779
        %v1781 = vrot.slane %v1780, 2
        %v1782 = vadd.f32 %v1780, %v1781
        %v1783 = vrot.slane %v1782, 1
        %v1784 = vadd.f32 %v1782, %v1783
        %v1785 = vsel %vm1266, %v1711, 0.0
        %v1786 = vsel %vm1266, %v1712, 0.0
        %v1787 = vadd.f32 %v1785, %v1786
        %v1788 = vrot.slane %v1787, 4
        %v1789 = vadd.f32 %v1787, %v1788
        %v1790 = vrot.slane %v1789, 2
        %v1791 = vadd.f32 %v1789, %v1790
        %v1792 = vrot.slane %v1791, 1
        %v1793 = vadd.f32 %v1791, %v1792
        %v1794 = vsel %vm1266, %v1713, 0.0
        %v1795 = vsel %vm1266, %v1714, 0.0
        %v1796 = vadd.f32 %v1794, %v1795
        %v1797 = vrot.slane %v1796, 4
        %v1798 = vadd.f32 %v1796, %v1797
        %v1799 = vrot.slane %v1798, 2
        %v1800 = vadd.f32 %v1798, %v1799
        %v1801 = vrot.slane %v1800, 1
        %v1802 = vadd.f32 %v1800, %v1801
        %v1803 = vsel %vm1266, %v1715, 0.0
        %v1804 = vsel %vm1266, %v1716, 0.0
        %v1805 = vadd.f32 %v1803, %v1804
        %v1806 = vrot.slane %v1805, 4
        %v1807 = vadd.f32 %v1805, %v1806
        %v1808 = vrot.slane %v1807, 2
        %v1809 = vadd.f32 %v1807, %v1808
        %v1810 = vrot.slane %v1809, 1
        %v1811 = vadd.f32 %v1809, %v1810
        %v1812 = vsel %vm1266, %v1717, 0.0
        %v1813 = vsel %vm1266, %v1718, 0.0
        %v1814 = vadd.f32 %v1812, %v1813
        %v1815 = vrot.slane %v1814, 4
        %v1816 = vadd.f32 %v1814, %v1815
        %v1817 = vrot.slane %v1816, 2
        %v1818 = vadd.f32 %v1816, %v1817
        %v1819 = vrot.slane %v1818, 1
        %v1820 = vadd.f32 %v1818, %v1819
        %v1821 = vsel %vm1266, %v1719, 0.0
        %v1822 = vsel %vm1266, %v1720, 0.0
        %v1823 = vadd.f32 %v1821, %v1822
        %v1824 = vrot.slane %v1823, 4
        %v1825 = vadd.f32 %v1823, %v1824
        %v1826 = vrot.slane %v1825, 2
        %v1827 = vadd.f32 %v1825, %v1826
        %v1828 = vrot.slane %v1827, 1
        %v1829 = vadd.f32 %v1827, %v1828
        %v1830 = vsel %vm1266, %v1721, 0.0
        %v1831 = vsel %vm1266, %v1722, 0.0
        %v1832 = vadd.f32 %v1830, %v1831
        %v1833 = vrot.slane %v1832, 4
        %v1834 = vadd.f32 %v1832, %v1833
        %v1835 = vrot.slane %v1834, 2
        %v1836 = vadd.f32 %v1834, %v1835
        %v1837 = vrot.slane %v1836, 1
        %v1838 = vadd.f32 %v1836, %v1837
        %v1839 = vsel %vm1266, %v1723, 0.0
        %v1840 = vsel %vm1266, %v1724, 0.0
        %v1841 = vadd.f32 %v1839, %v1840
        %v1842 = vrot.slane %v1841, 4
        %v1843 = vadd.f32 %v1841, %v1842
        %v1844 = vrot.slane %v1843, 2
        %v1845 = vadd.f32 %v1843, %v1844
        %v1846 = vrot.slane %v1845, 1
        %v1847 = vadd.f32 %v1845, %v1846
        %v1848 = vsel %vm1266, %v1725, 0.0
        %v1849 = vsel %vm1266, %v1726, 0.0
        %v1850 = vadd.f32 %v1848, %v1849
        %v1851 = vrot.slane %v1850, 4
        %v1852 = vadd.f32 %v1850, %v1851
        %v1853 = vrot.slane %v1852, 2
        %v1854 = vadd.f32 %v1852, %v1853
        %v1855 = vrot.slane %v1854, 1
        %v1856 = vadd.f32 %v1854, %v1855
        %v1857 = vsel %vm1266, %v1727, 0.0
        %v1858 = vsel %vm1266, %v1728, 0.0
        %v1859 = vadd.f32 %v1857, %v1858
        %v1860 = vrot.slane %v1859, 4
        %v1861 = vadd.f32 %v1859, %v1860
        %v1862 = vrot.slane %v1861, 2
        %v1863 = vadd.f32 %v1861, %v1862
        %v1864 = vrot.slane %v1863, 1
        %v1865 = vadd.f32 %v1863, %v1864
        %v1866 = vsel %vm1266, %v1729, 0.0
        %v1867 = vsel %vm1266, %v1730, 0.0
        %v1868 = vadd.f32 %v1866, %v1867
        %v1869 = vrot.slane %v1868, 4
        %v1870 = vadd.f32 %v1868, %v1869
        %v1871 = vrot.slane %v1870, 2
        %v1872 = vadd.f32 %v1870, %v1871
        %v1873 = vrot.slane %v1872, 1
        %v1874 = vadd.f32 %v1872, %v1873
        %v1875 = vmul.f32 %v1667, %v284
        %v1876 = vmul.f32 %v1668, %v285
        %v1877 = vmul.f32 %v1669, %v284
        %v1878 = vmul.f32 %v1670, %v285
        %v1879 = vmul.f32 %v1671, %v284
        %v1880 = vmul.f32 %v1672, %v285
        %v1881 = vmul.f32 %v1673, %v284
        %v1882 = vmul.f32 %v1674, %v285
        %v1883 = vmul.f32 %v1675, %v284
        %v1884 = vmul.f32 %v1676, %v285
        %v1885 = vmul.f32 %v1677, %v284
        %v1886 = vmul.f32 %v1678, %v285
        %v1887 = vmul.f32 %v1679, %v284
        %v1888 = vmul.f32 %v1680, %v285
        %v1889 = vmul.f32 %v1681, %v284
        %v1890 = vmul.f32 %v1682, %v285
        %v1891 = vmul.f32 %v1683, %v284
        %v1892 = vmul.f32 %v1684, %v285
        %v1893 = vmul.f32 %v1685, %v284
        %v1894 = vmul.f32 %v1686, %v285
        %v1895 = vmul.f32 %v1687, %v284
        %v1896 = vmul.f32 %v1688, %v285
        %v1897 = vmul.f32 %v1689, %v284
        %v1898 = vmul.f32 %v1690, %v285
        %v1899 = vmul.f32 %v1691, %v284
        %v1900 = vmul.f32 %v1692, %v285
        %v1901 = vmul.f32 %v1693, %v284
        %v1902 = vmul.f32 %v1694, %v285
        %v1903 = vmul.f32 %v1695, %v284
        %v1904 = vmul.f32 %v1696, %v285
        %v1905 = vmul.f32 %v1697, %v284
        %v1906 = vmul.f32 %v1698, %v285
        %v1907 = vsel %vm1266, %v1875, 0.0
        %v1908 = vsel %vm1266, %v1876, 0.0
        %v1909 = vadd.f32 %v1907, %v1908
        %v1910 = vrot.slane %v1909, 4
        %v1911 = vadd.f32 %v1909, %v1910
        %v1912 = vrot.slane %v1911, 2
        %v1913 = vadd.f32 %v1911, %v1912
        %v1914 = vrot.slane %v1913, 1
        %v1915 = vadd.f32 %v1913, %v1914
        %v1916 = vsel %vm1266, %v1877, 0.0
        %v1917 = vsel %vm1266, %v1878, 0.0
        %v1918 = vadd.f32 %v1916, %v1917
        %v1919 = vrot.slane %v1918, 4
        %v1920 = vadd.f32 %v1918, %v1919
        %v1921 = vrot.slane %v1920, 2
        %v1922 = vadd.f32 %v1920, %v1921
        %v1923 = vrot.slane %v1922, 1
        %v1924 = vadd.f32 %v1922, %v1923
        %v1925 = vsel %vm1266, %v1879, 0.0
        %v1926 = vsel %vm1266, %v1880, 0.0
        %v1927 = vadd.f32 %v1925, %v1926
        %v1928 = vrot.slane %v1927, 4
        %v1929 = vadd.f32 %v1927, %v1928
        %v1930 = vrot.slane %v1929, 2
        %v1931 = vadd.f32 %v1929, %v1930
        %v1932 = vrot.slane %v1931, 1
        %v1933 = vadd.f32 %v1931, %v1932
        %v1934 = vsel %vm1266, %v1881, 0.0
        %v1935 = vsel %vm1266, %v1882, 0.0
        %v1936 = vadd.f32 %v1934, %v1935
        %v1937 = vrot.slane %v1936, 4
        %v1938 = vadd.f32 %v1936, %v1937
        %v1939 = vrot.slane %v1938, 2
        %v1940 = vadd.f32 %v1938, %v1939
        %v1941 = vrot.slane %v1940, 1
        %v1942 = vadd.f32 %v1940, %v1941
        %v1943 = vsel %vm1266, %v1883, 0.0
        %v1944 = vsel %vm1266, %v1884, 0.0
        %v1945 = vadd.f32 %v1943, %v1944
        %v1946 = vrot.slane %v1945, 4
        %v1947 = vadd.f32 %v1945, %v1946
        %v1948 = vrot.slane %v1947, 2
        %v1949 = vadd.f32 %v1947, %v1948
        %v1950 = vrot.slane %v1949, 1
        %v1951 = vadd.f32 %v1949, %v1950
        %v1952 = vsel %vm1266, %v1885, 0.0
        %v1953 = vsel %vm1266, %v1886, 0.0
        %v1954 = vadd.f32 %v1952, %v1953
        %v1955 = vrot.slane %v1954, 4
        %v1956 = vadd.f32 %v1954, %v1955
        %v1957 = vrot.slane %v1956, 2
        %v1958 = vadd.f32 %v1956, %v1957
        %v1959 = vrot.slane %v1958, 1
        %v1960 = vadd.f32 %v1958, %v1959
        %v1961 = vsel %vm1266, %v1887, 0.0
        %v1962 = vsel %vm1266, %v1888, 0.0
        %v1963 = vadd.f32 %v1961, %v1962
        %v1964 = vrot.slane %v1963, 4
        %v1965 = vadd.f32 %v1963, %v1964
        %v1966 = vrot.slane %v1965, 2
        %v1967 = vadd.f32 %v1965, %v1966
        %v1968 = vrot.slane %v1967, 1
        %v1969 = vadd.f32 %v1967, %v1968
        %v1970 = vsel %vm1266, %v1889, 0.0
        %v1971 = vsel %vm1266, %v1890, 0.0
        %v1972 = vadd.f32 %v1970, %v1971
        %v1973 = vrot.slane %v1972, 4
        %v1974 = vadd.f32 %v1972, %v1973
        %v1975 = vrot.slane %v1974, 2
        %v1976 = vadd.f32 %v1974, %v1975
        %v1977 = vrot.slane %v1976, 1
        %v1978 = vadd.f32 %v1976, %v1977
        %v1979 = vsel %vm1266, %v1891, 0.0
        %v1980 = vsel %vm1266, %v1892, 0.0
        %v1981 = vadd.f32 %v1979, %v1980
        %v1982 = vrot.slane %v1981, 4
        %v1983 = vadd.f32 %v1981, %v1982
        %v1984 = vrot.slane %v1983, 2
        %v1985 = vadd.f32 %v1983, %v1984
        %v1986 = vrot.slane %v1985, 1
        %v1987 = vadd.f32 %v1985, %v1986
        %v1988 = vsel %vm1266, %v1893, 0.0
        %v1989 = vsel %vm1266, %v1894, 0.0
        %v1990 = vadd.f32 %v1988, %v1989
        %v1991 = vrot.slane %v1990, 4
        %v1992 = vadd.f32 %v1990, %v1991
        %v1993 = vrot.slane %v1992, 2
        %v1994 = vadd.f32 %v1992, %v1993
        %v1995 = vrot.slane %v1994, 1
        %v1996 = vadd.f32 %v1994, %v1995
        %v1997 = vsel %vm1266, %v1895, 0.0
        %v1998 = vsel %vm1266, %v1896, 0.0
        %v1999 = vadd.f32 %v1997, %v1998
        %v2000 = vrot.slane %v1999, 4
        %v2001 = vadd.f32 %v1999, %v2000
        %v2002 = vrot.slane %v2001, 2
        %v2003 = vadd.f32 %v2001, %v2002
        %v2004 = vrot.slane %v2003, 1
        %v2005 = vadd.f32 %v2003, %v2004
        %v2006 = vsel %vm1266, %v1897, 0.0
        %v2007 = vsel %vm1266, %v1898, 0.0
        %v2008 = vadd.f32 %v2006, %v2007
        %v2009 = vrot.slane %v2008, 4
        %v2010 = vadd.f32 %v2008, %v2009
        %v2011 = vrot.slane %v2010, 2
        %v2012 = vadd.f32 %v2010, %v2011
        %v2013 = vrot.slane %v2012, 1
        %v2014 = vadd.f32 %v2012, %v2013
        %v2015 = vsel %vm1266, %v1899, 0.0
        %v2016 = vsel %vm1266, %v1900, 0.0
        %v2017 = vadd.f32 %v2015, %v2016
        %v2018 = vrot.slane %v2017, 4
        %v2019 = vadd.f32 %v2017, %v2018
        %v2020 = vrot.slane %v2019, 2
        %v2021 = vadd.f32 %v2019, %v2020
        %v2022 = vrot.slane %v2021, 1
        %v2023 = vadd.f32 %v2021, %v2022
        %v2024 = vsel %vm1266, %v1901, 0.0
        %v2025 = vsel %vm1266, %v1902, 0.0
        %v2026 = vadd.f32 %v2024, %v2025
        %v2027 = vrot.slane %v2026, 4
        %v2028 = vadd.f32 %v2026, %v2027
        %v2029 = vrot.slane %v2028, 2
        %v2030 = vadd.f32 %v2028, %v2029
        %v2031 = vrot.slane %v2030, 1
        %v2032 = vadd.f32 %v2030, %v2031
        %v2033 = vsel %vm1266, %v1903, 0.0
        %v2034 = vsel %vm1266, %v1904, 0.0
        %v2035 = vadd.f32 %v2033, %v2034
        %v2036 = vrot.slane %v2035, 4
        %v2037 = vadd.f32 %v2035, %v2036
        %v2038 = vrot.slane %v2037, 2
        %v2039 = vadd.f32 %v2037, %v2038
        %v2040 = vrot.slane %v2039, 1
        %v2041 = vadd.f32 %v2039, %v2040
        %v2042 = vsel %vm1266, %v1905, 0.0
        %v2043 = vsel %vm1266, %v1906, 0.0
        %v2044 = vadd.f32 %v2042, %v2043
        %v2045 = vrot.slane %v2044, 4
        %v2046 = vadd.f32 %v2044, %v2045
        %v2047 = vrot.slane %v2046, 2
        %v2048 = vadd.f32 %v2046, %v2047
        %v2049 = vrot.slane %v2048, 1
        %v2050 = vadd.f32 %v2048, %v2049
        %v2051 = vmul.f32 %v1667, %v286
        %v2052 = vmul.f32 %v1668, %v287
        %v2053 = vmul.f32 %v1669, %v286
        %v2054 = vmul.f32 %v1670, %v287
        %v2055 = vmul.f32 %v1671, %v286
        %v2056 = vmul.f32 %v1672, %v287
        %v2057 = vmul.f32 %v1673, %v286
        %v2058 = vmul.f32 %v1674, %v287
        %v2059 = vmul.f32 %v1675, %v286
        %v2060 = vmul.f32 %v1676, %v287
        %v2061 = vmul.f32 %v1677, %v286
        %v2062 = vmul.f32 %v1678, %v287
        %v2063 = vmul.f32 %v1679, %v286
        %v2064 = vmul.f32 %v1680, %v287
        %v2065 = vmul.f32 %v1681, %v286
        %v2066 = vmul.f32 %v1682, %v287
        %v2067 = vmul.f32 %v1683, %v286
        %v2068 = vmul.f32 %v1684, %v287
        %v2069 = vmul.f32 %v1685, %v286
        %v2070 = vmul.f32 %v1686, %v287
        %v2071 = vmul.f32 %v1687, %v286
        %v2072 = vmul.f32 %v1688, %v287
        %v2073 = vmul.f32 %v1689, %v286
        %v2074 = vmul.f32 %v1690, %v287
        %v2075 = vmul.f32 %v1691, %v286
        %v2076 = vmul.f32 %v1692, %v287
        %v2077 = vmul.f32 %v1693, %v286
        %v2078 = vmul.f32 %v1694, %v287
        %v2079 = vmul.f32 %v1695, %v286
        %v2080 = vmul.f32 %v1696, %v287
        %v2081 = vmul.f32 %v1697, %v286
        %v2082 = vmul.f32 %v1698, %v287
        %v2083 = vsel %vm1266, %v2051, 0.0
        %v2084 = vsel %vm1266, %v2052, 0.0
        %v2085 = vadd.f32 %v2083, %v2084
        %v2086 = vrot.slane %v2085, 4
        %v2087 = vadd.f32 %v2085, %v2086
        %v2088 = vrot.slane %v2087, 2
        %v2089 = vadd.f32 %v2087, %v2088
        %v2090 = vrot.slane %v2089, 1
        %v2091 = vadd.f32 %v2089, %v2090
        %v2092 = vsel %vm1266, %v2053, 0.0
        %v2093 = vsel %vm1266, %v2054, 0.0
        %v2094 = vadd.f32 %v2092, %v2093
        %v2095 = vrot.slane %v2094, 4
        %v2096 = vadd.f32 %v2094, %v2095
        %v2097 = vrot.slane %v2096, 2
        %v2098 = vadd.f32 %v2096, %v2097
        %v2099 = vrot.slane %v2098, 1
        %v2100 = vadd.f32 %v2098, %v2099
        %v2101 = vsel %vm1266, %v2055, 0.0
        %v2102 = vsel %vm1266, %v2056, 0.0
        %v2103 = vadd.f32 %v2101, %v2102
        %v2104 = vrot.slane %v2103, 4
        %v2105 = vadd.f32 %v2103, %v2104
        %v2106 = vrot.slane %v2105, 2
        %v2107 = vadd.f32 %v2105, %v2106
        %v2108 = vrot.slane %v2107, 1
        %v2109 = vadd.f32 %v2107, %v2108
        %v2110 = vsel %vm1266, %v2057, 0.0
        %v2111 = vsel %vm1266, %v2058, 0.0
        %v2112 = vadd.f32 %v2110, %v2111
        %v2113 = vrot.slane %v2112, 4
        %v2114 = vadd.f32 %v2112, %v2113
        %v2115 = vrot.slane %v2114, 2
        %v2116 = vadd.f32 %v2114, %v2115
        %v2117 = vrot.slane %v2116, 1
        %v2118 = vadd.f32 %v2116, %v2117
        %v2119 = vsel %vm1266, %v2059, 0.0
        %v2120 = vsel %vm1266, %v2060, 0.0
        %v2121 = vadd.f32 %v2119, %v2120
        %v2122 = vrot.slane %v2121, 4
        %v2123 = vadd.f32 %v2121, %v2122
        %v2124 = vrot.slane %v2123, 2
        %v2125 = vadd.f32 %v2123, %v2124
        %v2126 = vrot.slane %v2125, 1
        %v2127 = vadd.f32 %v2125, %v2126
        %v2128 = vsel %vm1266, %v2061, 0.0
        %v2129 = vsel %vm1266, %v2062, 0.0
        %v2130 = vadd.f32 %v2128, %v2129
        %v2131 = vrot.slane %v2130, 4
        %v2132 = vadd.f32 %v2130, %v2131
        %v2133 = vrot.slane %v2132, 2
        %v2134 = vadd.f32 %v2132, %v2133
        %v2135 = vrot.slane %v2134, 1
        %v2136 = vadd.f32 %v2134, %v2135
        %v2137 = vsel %vm1266, %v2063, 0.0
        %v2138 = vsel %vm1266, %v2064, 0.0
        %v2139 = vadd.f32 %v2137, %v2138
        %v2140 = vrot.slane %v2139, 4
        %v2141 = vadd.f32 %v2139, %v2140
        %v2142 = vrot.slane %v2141, 2
        %v2143 = vadd.f32 %v2141, %v2142
        %v2144 = vrot.slane %v2143, 1
        %v2145 = vadd.f32 %v2143, %v2144
        %v2146 = vsel %vm1266, %v2065, 0.0
        %v2147 = vsel %vm1266, %v2066, 0.0
        %v2148 = vadd.f32 %v2146, %v2147
        %v2149 = vrot.slane %v2148, 4
        %v2150 = vadd.f32 %v2148, %v2149
        %v2151 = vrot.slane %v2150, 2
        %v2152 = vadd.f32 %v2150, %v2151
        %v2153 = vrot.slane %v2152, 1
        %v2154 = vadd.f32 %v2152, %v2153
        %v2155 = vsel %vm1266, %v2067, 0.0
        %v2156 = vsel %vm1266, %v2068, 0.0
        %v2157 = vadd.f32 %v2155, %v2156
        %v2158 = vrot.slane %v2157, 4
        %v2159 = vadd.f32 %v2157, %v2158
        %v2160 = vrot.slane %v2159, 2
        %v2161 = vadd.f32 %v2159, %v2160
        %v2162 = vrot.slane %v2161, 1
        %v2163 = vadd.f32 %v2161, %v2162
        %v2164 = vsel %vm1266, %v2069, 0.0
        %v2165 = vsel %vm1266, %v2070, 0.0
        %v2166 = vadd.f32 %v2164, %v2165
        %v2167 = vrot.slane %v2166, 4
        %v2168 = vadd.f32 %v2166, %v2167
        %v2169 = vrot.slane %v2168, 2
        %v2170 = vadd.f32 %v2168, %v2169
        %v2171 = vrot.slane %v2170, 1
        %v2172 = vadd.f32 %v2170, %v2171
        %v2173 = vsel %vm1266, %v2071, 0.0
        %v2174 = vsel %vm1266, %v2072, 0.0
        %v2175 = vadd.f32 %v2173, %v2174
        %v2176 = vrot.slane %v2175, 4
        %v2177 = vadd.f32 %v2175, %v2176
        %v2178 = vrot.slane %v2177, 2
        %v2179 = vadd.f32 %v2177, %v2178
        %v2180 = vrot.slane %v2179, 1
        %v2181 = vadd.f32 %v2179, %v2180
        %v2182 = vsel %vm1266, %v2073, 0.0
        %v2183 = vsel %vm1266, %v2074, 0.0
        %v2184 = vadd.f32 %v2182, %v2183
        %v2185 = vrot.slane %v2184, 4
        %v2186 = vadd.f32 %v2184, %v2185
        %v2187 = vrot.slane %v2186, 2
        %v2188 = vadd.f32 %v2186, %v2187
        %v2189 = vrot.slane %v2188, 1
        %v2190 = vadd.f32 %v2188, %v2189
        %v2191 = vsel %vm1266, %v2075, 0.0
        %v2192 = vsel %vm1266, %v2076, 0.0
        %v2193 = vadd.f32 %v2191, %v2192
        %v2194 = vrot.slane %v2193, 4
        %v2195 = vadd.f32 %v2193, %v2194
        %v2196 = vrot.slane %v2195, 2
        %v2197 = vadd.f32 %v2195, %v2196
        %v2198 = vrot.slane %v2197, 1
        %v2199 = vadd.f32 %v2197, %v2198
        %v2200 = vsel %vm1266, %v2077, 0.0
        %v2201 = vsel %vm1266, %v2078, 0.0
        %v2202 = vadd.f32 %v2200, %v2201
        %v2203 = vrot.slane %v2202, 4
        %v2204 = vadd.f32 %v2202, %v2203
        %v2205 = vrot.slane %v2204, 2
        %v2206 = vadd.f32 %v2204, %v2205
        %v2207 = vrot.slane %v2206, 1
        %v2208 = vadd.f32 %v2206, %v2207
        %v2209 = vsel %vm1266, %v2079, 0.0
        %v2210 = vsel %vm1266, %v2080, 0.0
        %v2211 = vadd.f32 %v2209, %v2210
        %v2212 = vrot.slane %v2211, 4
        %v2213 = vadd.f32 %v2211, %v2212
        %v2214 = vrot.slane %v2213, 2
        %v2215 = vadd.f32 %v2213, %v2214
        %v2216 = vrot.slane %v2215, 1
        %v2217 = vadd.f32 %v2215, %v2216
        %v2218 = vsel %vm1266, %v2081, 0.0
        %v2219 = vsel %vm1266, %v2082, 0.0
        %v2220 = vadd.f32 %v2218, %v2219
        %v2221 = vrot.slane %v2220, 4
        %v2222 = vadd.f32 %v2220, %v2221
        %v2223 = vrot.slane %v2222, 2
        %v2224 = vadd.f32 %v2222, %v2223
        %v2225 = vrot.slane %v2224, 1
        %v2226 = vadd.f32 %v2224, %v2225
        %v2227 = vmul.f32 %v1667, %v288
        %v2228 = vmul.f32 %v1668, %v289
        %v2229 = vmul.f32 %v1669, %v288
        %v2230 = vmul.f32 %v1670, %v289
        %v2231 = vmul.f32 %v1671, %v288
        %v2232 = vmul.f32 %v1672, %v289
        %v2233 = vmul.f32 %v1673, %v288
        %v2234 = vmul.f32 %v1674, %v289
        %v2235 = vmul.f32 %v1675, %v288
        %v2236 = vmul.f32 %v1676, %v289
        %v2237 = vmul.f32 %v1677, %v288
        %v2238 = vmul.f32 %v1678, %v289
        %v2239 = vmul.f32 %v1679, %v288
        %v2240 = vmul.f32 %v1680, %v289
        %v2241 = vmul.f32 %v1681, %v288
        %v2242 = vmul.f32 %v1682, %v289
        %v2243 = vmul.f32 %v1683, %v288
        %v2244 = vmul.f32 %v1684, %v289
        %v2245 = vmul.f32 %v1685, %v288
        %v2246 = vmul.f32 %v1686, %v289
        %v2247 = vmul.f32 %v1687, %v288
        %v2248 = vmul.f32 %v1688, %v289
        %v2249 = vmul.f32 %v1689, %v288
        %v2250 = vmul.f32 %v1690, %v289
        %v2251 = vmul.f32 %v1691, %v288
        %v2252 = vmul.f32 %v1692, %v289
        %v2253 = vmul.f32 %v1693, %v288
        %v2254 = vmul.f32 %v1694, %v289
        %v2255 = vmul.f32 %v1695, %v288
        %v2256 = vmul.f32 %v1696, %v289
        %v2257 = vmul.f32 %v1697, %v288
        %v2258 = vmul.f32 %v1698, %v289
        %v2259 = vsel %vm1266, %v2227, 0.0
        %v2260 = vsel %vm1266, %v2228, 0.0
        %v2261 = vadd.f32 %v2259, %v2260
        %v2262 = vrot.slane %v2261, 4
        %v2263 = vadd.f32 %v2261, %v2262
        %v2264 = vrot.slane %v2263, 2
        %v2265 = vadd.f32 %v2263, %v2264
        %v2266 = vrot.slane %v2265, 1
        %v2267 = vadd.f32 %v2265, %v2266
        %v2268 = vsel %vm1266, %v2229, 0.0
        %v2269 = vsel %vm1266, %v2230, 0.0
        %v2270 = vadd.f32 %v2268, %v2269
        %v2271 = vrot.slane %v2270, 4
        %v2272 = vadd.f32 %v2270, %v2271
        %v2273 = vrot.slane %v2272, 2
        %v2274 = vadd.f32 %v2272, %v2273
        %v2275 = vrot.slane %v2274, 1
        %v2276 = vadd.f32 %v2274, %v2275
        %v2277 = vsel %vm1266, %v2231, 0.0
        %v2278 = vsel %vm1266, %v2232, 0.0
        %v2279 = vadd.f32 %v2277, %v2278
        %v2280 = vrot.slane %v2279, 4
        %v2281 = vadd.f32 %v2279, %v2280
        %v2282 = vrot.slane %v2281, 2
        %v2283 = vadd.f32 %v2281, %v2282
        %v2284 = vrot.slane %v2283, 1
        %v2285 = vadd.f32 %v2283, %v2284
        %v2286 = vsel %vm1266, %v2233, 0.0
        %v2287 = vsel %vm1266, %v2234, 0.0
        %v2288 = vadd.f32 %v2286, %v2287
        %v2289 = vrot.slane %v2288, 4
        %v2290 = vadd.f32 %v2288, %v2289
        %v2291 = vrot.slane %v2290, 2
        %v2292 = vadd.f32 %v2290, %v2291
        %v2293 = vrot.slane %v2292, 1
        %v2294 = vadd.f32 %v2292, %v2293
        %v2295 = vsel %vm1266, %v2235, 0.0
        %v2296 = vsel %vm1266, %v2236, 0.0
        %v2297 = vadd.f32 %v2295, %v2296
        %v2298 = vrot.slane %v2297, 4
        %v2299 = vadd.f32 %v2297, %v2298
        %v2300 = vrot.slane %v2299, 2
        %v2301 = vadd.f32 %v2299, %v2300
        %v2302 = vrot.slane %v2301, 1
        %v2303 = vadd.f32 %v2301, %v2302
        %v2304 = vsel %vm1266, %v2237, 0.0
        %v2305 = vsel %vm1266, %v2238, 0.0
        %v2306 = vadd.f32 %v2304, %v2305
        %v2307 = vrot.slane %v2306, 4
        %v2308 = vadd.f32 %v2306, %v2307
        %v2309 = vrot.slane %v2308, 2
        %v2310 = vadd.f32 %v2308, %v2309
        %v2311 = vrot.slane %v2310, 1
        %v2312 = vadd.f32 %v2310, %v2311
        %v2313 = vsel %vm1266, %v2239, 0.0
        %v2314 = vsel %vm1266, %v2240, 0.0
        %v2315 = vadd.f32 %v2313, %v2314
        %v2316 = vrot.slane %v2315, 4
        %v2317 = vadd.f32 %v2315, %v2316
        %v2318 = vrot.slane %v2317, 2
        %v2319 = vadd.f32 %v2317, %v2318
        %v2320 = vrot.slane %v2319, 1
        %v2321 = vadd.f32 %v2319, %v2320
        %v2322 = vsel %vm1266, %v2241, 0.0
        %v2323 = vsel %vm1266, %v2242, 0.0
        %v2324 = vadd.f32 %v2322, %v2323
        %v2325 = vrot.slane %v2324, 4
        %v2326 = vadd.f32 %v2324, %v2325
        %v2327 = vrot.slane %v2326, 2
        %v2328 = vadd.f32 %v2326, %v2327
        %v2329 = vrot.slane %v2328, 1
        %v2330 = vadd.f32 %v2328, %v2329
        %v2331 = vsel %vm1266, %v2243, 0.0
        %v2332 = vsel %vm1266, %v2244, 0.0
        %v2333 = vadd.f32 %v2331, %v2332
        %v2334 = vrot.slane %v2333, 4
        %v2335 = vadd.f32 %v2333, %v2334
        %v2336 = vrot.slane %v2335, 2
        %v2337 = vadd.f32 %v2335, %v2336
        %v2338 = vrot.slane %v2337, 1
        %v2339 = vadd.f32 %v2337, %v2338
        %v2340 = vsel %vm1266, %v2245, 0.0
        %v2341 = vsel %vm1266, %v2246, 0.0
        %v2342 = vadd.f32 %v2340, %v2341
        %v2343 = vrot.slane %v2342, 4
        %v2344 = vadd.f32 %v2342, %v2343
        %v2345 = vrot.slane %v2344, 2
        %v2346 = vadd.f32 %v2344, %v2345
        %v2347 = vrot.slane %v2346, 1
        %v2348 = vadd.f32 %v2346, %v2347
        %v2349 = vsel %vm1266, %v2247, 0.0
        %v2350 = vsel %vm1266, %v2248, 0.0
        %v2351 = vadd.f32 %v2349, %v2350
        %v2352 = vrot.slane %v2351, 4
        %v2353 = vadd.f32 %v2351, %v2352
        %v2354 = vrot.slane %v2353, 2
        %v2355 = vadd.f32 %v2353, %v2354
        %v2356 = vrot.slane %v2355, 1
        %v2357 = vadd.f32 %v2355, %v2356
        %v2358 = vsel %vm1266, %v2249, 0.0
        %v2359 = vsel %vm1266, %v2250, 0.0
        %v2360 = vadd.f32 %v2358, %v2359
        %v2361 = vrot.slane %v2360, 4
        %v2362 = vadd.f32 %v2360, %v2361
        %v2363 = vrot.slane %v2362, 2
        %v2364 = vadd.f32 %v2362, %v2363
        %v2365 = vrot.slane %v2364, 1
        %v2366 = vadd.f32 %v2364, %v2365
        %v2367 = vsel %vm1266, %v2251, 0.0
        %v2368 = vsel %vm1266, %v2252, 0.0
        %v2369 = vadd.f32 %v2367, %v2368
        %v2370 = vrot.slane %v2369, 4
        %v2371 = vadd.f32 %v2369, %v2370
        %v2372 = vrot.slane %v2371, 2
        %v2373 = vadd.f32 %v2371, %v2372
        %v2374 = vrot.slane %v2373, 1
        %v2375 = vadd.f32 %v2373, %v2374
        %v2376 = vsel %vm1266, %v2253, 0.0
        %v2377 = vsel %vm1266, %v2254, 0.0
        %v2378 = vadd.f32 %v2376, %v2377
        %v2379 = vrot.slane %v2378, 4
        %v2380 = vadd.f32 %v2378, %v2379
        %v2381 = vrot.slane %v2380, 2
        %v2382 = vadd.f32 %v2380, %v2381
        %v2383 = vrot.slane %v2382, 1
        %v2384 = vadd.f32 %v2382, %v2383
        %v2385 = vsel %vm1266, %v2255, 0.0
        %v2386 = vsel %vm1266, %v2256, 0.0
        %v2387 = vadd.f32 %v2385, %v2386
        %v2388 = vrot.slane %v2387, 4
        %v2389 = vadd.f32 %v2387, %v2388
        %v2390 = vrot.slane %v2389, 2
        %v2391 = vadd.f32 %v2389, %v2390
        %v2392 = vrot.slane %v2391, 1
        %v2393 = vadd.f32 %v2391, %v2392
        %v2394 = vsel %vm1266, %v2257, 0.0
        %v2395 = vsel %vm1266, %v2258, 0.0
        %v2396 = vadd.f32 %v2394, %v2395
        %v2397 = vrot.slane %v2396, 4
        %v2398 = vadd.f32 %v2396, %v2397
        %v2399 = vrot.slane %v2398, 2
        %v2400 = vadd.f32 %v2398, %v2399
        %v2401 = vrot.slane %v2400, 1
        %v2402 = vadd.f32 %v2400, %v2401
        %v2467 = vrot.slane %v1748, 7
        %vm2468 = vcmask 1041409
        %v2469 = vsel %vm2468, %v2467, %v1739
        %v2470 = vrot.slane %v1757, 6
        %vm2471 = vcmask 1042434
        %v2472 = vsel %vm2471, %v2470, %v2469
        %v2473 = vrot.slane %v1766, 5
        %vm2474 = vcmask 1043459
        %v2475 = vsel %vm2474, %v2473, %v2472
        %v2476 = vrot.slane %v1775, 4
        %vm2477 = vcmask 1044484
        %v2478 = vsel %vm2477, %v2476, %v2475
        %v2479 = vrot.slane %v1784, 3
        %vm2480 = vcmask 1045509
        %v2481 = vsel %vm2480, %v2479, %v2478
        %v2482 = vrot.slane %v1793, 2
        %vm2483 = vcmask 1046534
        %v2484 = vsel %vm2483, %v2482, %v2481
        %v2485 = vrot.slane %v1802, 1
        %vm2486 = vcmask 1047559
        %v2487 = vsel %vm2486, %v2485, %v2484
        %v2488 = vrot.slane %v1820, 7
        %v2489 = vsel %vm2468, %v2488, %v1811
        %v2490 = vrot.slane %v1829, 6
        %v2491 = vsel %vm2471, %v2490, %v2489
        %v2492 = vrot.slane %v1838, 5
        %v2493 = vsel %vm2474, %v2492, %v2491
        %v2494 = vrot.slane %v1847, 4
        %v2495 = vsel %vm2477, %v2494, %v2493
        %v2496 = vrot.slane %v1856, 3
        %v2497 = vsel %vm2480, %v2496, %v2495
        %v2498 = vrot.slane %v1865, 2
        %v2499 = vsel %vm2483, %v2498, %v2497
        %v2500 = vrot.slane %v1874, 1
        %v2501 = vsel %vm2486, %v2500, %v2499
        %v2502 = vrot.slane %v1924, 7
        %v2503 = vsel %vm2468, %v2502, %v1915
        %v2504 = vrot.slane %v1933, 6
        %v2505 = vsel %vm2471, %v2504, %v2503
        %v2506 = vrot.slane %v1942, 5
        %v2507 = vsel %vm2474, %v2506, %v2505
        %v2508 = vrot.slane %v1951, 4
        %v2509 = vsel %vm2477, %v2508, %v2507
        %v2510 = vrot.slane %v1960, 3
        %v2511 = vsel %vm2480, %v2510, %v2509
        %v2512 = vrot.slane %v1969, 2
        %v2513 = vsel %vm2483, %v2512, %v2511
        %v2514 = vrot.slane %v1978, 1
        %v2515 = vsel %vm2486, %v2514, %v2513
        %v2516 = vrot.slane %v1996, 7
        %v2517 = vsel %vm2468, %v2516, %v1987
        %v2518 = vrot.slane %v2005, 6
        %v2519 = vsel %vm2471, %v2518, %v2517
        %v2520 = vrot.slane %v2014, 5
        %v2521 = vsel %vm2474, %v2520, %v2519
        %v2522 = vrot.slane %v2023, 4
        %v2523 = vsel %vm2477, %v2522, %v2521
        %v2524 = vrot.slane %v2032, 3
        %v2525 = vsel %vm2480, %v2524, %v2523
        %v2526 = vrot.slane %v2041, 2
        %v2527 = vsel %vm2483, %v2526, %v2525
        %v2528 = vrot.slane %v2050, 1
        %v2529 = vsel %vm2486, %v2528, %v2527
        %v2530 = vrot.slane %v2100, 7
        %v2531 = vsel %vm2468, %v2530, %v2091
        %v2532 = vrot.slane %v2109, 6
        %v2533 = vsel %vm2471, %v2532, %v2531
        %v2534 = vrot.slane %v2118, 5
        %v2535 = vsel %vm2474, %v2534, %v2533
        %v2536 = vrot.slane %v2127, 4
        %v2537 = vsel %vm2477, %v2536, %v2535
        %v2538 = vrot.slane %v2136, 3
        %v2539 = vsel %vm2480, %v2538, %v2537
        %v2540 = vrot.slane %v2145, 2
        %v2541 = vsel %vm2483, %v2540, %v2539
        %v2542 = vrot.slane %v2154, 1
        %v2543 = vsel %vm2486, %v2542, %v2541
        %v2544 = vrot.slane %v2172, 7
        %v2545 = vsel %vm2468, %v2544, %v2163
        %v2546 = vrot.slane %v2181, 6
        %v2547 = vsel %vm2471, %v2546, %v2545
        %v2548 = vrot.slane %v2190, 5
        %v2549 = vsel %vm2474, %v2548, %v2547
        %v2550 = vrot.slane %v2199, 4
        %v2551 = vsel %vm2477, %v2550, %v2549
        %v2552 = vrot.slane %v2208, 3
        %v2553 = vsel %vm2480, %v2552, %v2551
        %v2554 = vrot.slane %v2217, 2
        %v2555 = vsel %vm2483, %v2554, %v2553
        %v2556 = vrot.slane %v2226, 1
        %v2557 = vsel %vm2486, %v2556, %v2555
        %v2558 = vrot.slane %v2276, 7
        %v2559 = vsel %vm2468, %v2558, %v2267
        %v2560 = vrot.slane %v2285, 6
        %v2561 = vsel %vm2471, %v2560, %v2559
        %v2562 = vrot.slane %v2294, 5
        %v2563 = vsel %vm2474, %v2562, %v2561
        %v2564 = vrot.slane %v2303, 4
        %v2565 = vsel %vm2477, %v2564, %v2563
        %v2566 = vrot.slane %v2312, 3
        %v2567 = vsel %vm2480, %v2566, %v2565
        %v2568 = vrot.slane %v2321, 2
        %v2569 = vsel %vm2483, %v2568, %v2567
        %v2570 = vrot.slane %v2330, 1
        %v2571 = vsel %vm2486, %v2570, %v2569
        %v2572 = vrot.slane %v2348, 7
        %v2573 = vsel %vm2468, %v2572, %v2339
        %v2574 = vrot.slane %v2357, 6
        %v2575 = vsel %vm2471, %v2574, %v2573
        %v2576 = vrot.slane %v2366, 5
        %v2577 = vsel %vm2474, %v2576, %v2575
        %v2578 = vrot.slane %v2375, 4
        %v2579 = vsel %vm2477, %v2578, %v2577
        %v2580 = vrot.slane %v2384, 3
        %v2581 = vsel %vm2480, %v2580, %v2579
        %v2582 = vrot.slane %v2393, 2
        %v2583 = vsel %vm2483, %v2582, %v2581
        %v2584 = vrot.slane %v2402, 1
        %v2585 = vsel %vm2486, %v2584, %v2583
        %2594 = vst.msk [vmem:[%s265] sm:$0xff] %vm1266, %v2487
        %2595 = vst.msk [vmem:[%s265 + $0x8] sm:$0xff] %vm1266, %v2501
        %2596 = vst.msk [vmem:[%s265 + $0x10] sm:$0xff] %vm1266, %v2515
        %2597 = vst.msk [vmem:[%s265 + $0x18] sm:$0xff] %vm1266, %v2529
        %2598 = vst.msk [vmem:[%s265 + $0x20] sm:$0xff] %vm1266, %v2543
        %2599 = vst.msk [vmem:[%s265 + $0x28] sm:$0xff] %vm1266, %v2557
        %2600 = vst.msk [vmem:[%s265 + $0x30] sm:$0xff] %vm1266, %v2571
        %2601 = vst.msk [vmem:[%s265 + $0x38] sm:$0xff] %vm1266, %v2585
        %s2602 = sand.u32 %s109, 1
        %s2603 = scalar_lea.sflag [#allocation4], %s2602
        %s2604 = sand.u32 %s109, 1
        %s2605 = smul.addr %s2604, 64
        %s2606 = scalar_lea.vmem [#allocation8], %s2605
        // Predicated region
        $region45: #{tpu_custom_call.1} parent=31 // pred_check
          %p2607 = pneg %p119
        $region46: #{tpu_custom_call.1} parent=31 // pred_check_branch
          %2609 = sbr.rel (%p2607) target = $region48
        $region47: #{tpu_custom_call.1} parent=31 // pred_region
          %s2611 = ssub.s32 1024, 1024
          %2612 = vsyncadd %s2603, %s2611
          %s2613 = smul.addr %s23, 8
          %s2614 = smul.addr %s2613, 128
          %s2615 = scalar_lea.hbm %s3, %s2614
          %s2616 = sshll.u32 %s2606, 4
          %s2617 = int_to_ptr.vmem [resolvable:$true] %s2616
          %2622 = dma.vmem_to_hbm [thread:$0]  %s2617, 1024, %s2615, %s2603, 128, 128, 8
        $region48: #{tpu_custom_call.1} parent=31 // pred_fallthru
          _
      $region32: #{tpu_custom_call.1} parent=5 // pred_fallthru
        _
      %p2623 = scmp.le.s32.totalorder 2, %s18
      // Predicated region
      $region49: #{tpu_custom_call.1} parent=5 // pred_check
        %p2624 = pneg %p2623
      $region50: #{tpu_custom_call.1} parent=5 // pred_check_branch
        %2626 = sbr.rel (%p2624) target = $region52
      $region51: #{tpu_custom_call.1} parent=5 // pred_region
        %s2627 = ssub.s32 %s18, 2
        // Predicated region
        $region53: #{tpu_custom_call.1} parent=51 // pred_check
          %p2628 = pneg %p125
        $region54: #{tpu_custom_call.1} parent=51 // pred_check_branch
          %2630 = sbr.rel (%p2628) target = $region56
        $region55: #{tpu_custom_call.1} parent=51 // pred_region
          %s2631 = sand.u32 %s110, 1
          %s2632 = scalar_lea.sflag [#allocation4], %s2631
          %s2633 = sand.u32 %s110, 1
          %s2634 = smul.addr %s2633, 64
          %s2635 = scalar_lea.vmem [#allocation8], %s2634
          %2636 = dma.done %s2632, 1024
        $region56: #{tpu_custom_call.1} parent=51 // pred_fallthru
          _
      $region52: #{tpu_custom_call.1} parent=5 // pred_fallthru
        _
    $region6: #{tpu_custom_call.1} parent=1 // loop_footer
      %s22 = sadd.s32 1, %s18
    $region7: #{tpu_custom_call.1} parent=1 // loop_footer_branch
      %17 = sbr.rel target = $region3
    $region8: #{tpu_custom_call.1} parent=1 // loop_exit
      _
    %2637 = vsyncpa [#allocation3], 1
    %s2638 = scalar_lea.sflag [#allocation3], 1
    %2639 = vsyncpa %s2638, 1
    %2640 = vsyncpa [#allocation6], 1
    %s2641 = scalar_lea.sflag [#allocation6], 1
    %2642 = vsyncpa %s2641, 1
    %2643 = vsyncpa [#allocation4], 1
    %s2644 = scalar_lea.sflag [#allocation4], 1
    %2645 = vsyncpa %s2644, 1

</llo_original>
